<compile_context>
chip_gen: v6e
topology: v6e:2x2x1
jax: 0.10.0
libtpu: 0.0.40
codegen_flags: <defaults>
</compile_context>

<pallas_src>
import numpy as np
import jax
import jax.numpy as jnp
from jax.experimental import pallas as pl
from jax.experimental.pallas import tpu as pltpu

D_IN = 32            # d_in
N_PTS = 128          # points per room
N_PLANES = 3         # planes per room
N_ROOMS = 2          # batch of rooms (one launch for all of them)
DIST_THR = 0.1
SLAB_W = 128         # packed per-plane output: [on_feat(32) | off_feat(32) | 3 counts | pad]
assert SLAB_W >= 2 * D_IN + 3


def plane_refine_kernel(feat_ref, clouds_ref, planes_ref,
                        w1_ref, s1_ref, b1_ref,
                        w2_ref, s2_ref, b2_ref,
                        w3_ref, b3_ref,
                        pres_ref, mask_ref, on_ref, off_ref, slab_ref):
    neg = jnp.float32(-1e30)
    feat = feat_ref[0]      # (2d, N)  room feature = cat(feature, feature_geo), channels-first
    clouds = clouds_ref[0]  # (3, N)   room_clouds = xyz + center, coords-first (lane-dense)
    pr = planes_ref[0]      # (P, 12)  = [center(3) | normal(3) | xyz_min(3) | xyz_max(3)]

    # fc1 / fc2: 1x1 conv (+ folded eval-mode BN) + ReLU.  Per-point ops commute with the
    # plane masking, so they are computed once for all points / all planes.
    h1 = jnp.maximum(jnp.dot(w1_ref[...], feat, preferred_element_type=jnp.float32)
                     * s1_ref[...] + b1_ref[...], 0.0)              # (d, N)
    h2 = jnp.maximum(jnp.dot(w2_ref[...], h1, preferred_element_type=jnp.float32)
                     * s2_ref[...] + b2_ref[...], 0.0)              # (d, N)  plane_feature
    # fc3: conv(bias) + ReLU  -> plane_result per point.  sigmoid(x) > 0.5  <=>  x > 0.
    pres = jnp.maximum(jnp.dot(w3_ref[...], h2, preferred_element_type=jnp.float32)
                       + b3_ref[...], 0.0)                          # (1, N)
    pres_ref[0] = pres

    center = pr[:, 0:3]
    normal = pr[:, 3:6]
    lo = pr[:, 6:9]
    hi = pr[:, 9:12]

    # dist = |(clouds - center) . normal|  -- 3-term VPU broadcast mul-add, lane-dense.
    proj = (normal[:, 0:1] * clouds[0:1, :] +
            normal[:, 1:2] * clouds[1:2, :] +
            normal[:, 2:3] * clouds[2:3, :])                        # (P, N)
    d0 = (center[:, 0:1] * normal[:, 0:1] +
          center[:, 1:2] * normal[:, 1:2] +
          center[:, 2:3] * normal[:, 2:3])                          # (P, 1)
    dist = jnp.abs(proj - d0)

    valid = dist < jnp.float32(DIST_THR)                            # (P, N)
    # range mask over the coords whose xyz_max is nonzero.
    # TODO(synk): original indexes only the first two nonzero coords; with the planar
    # CSVs (exactly two nonzero) this is identical.
    for q in range(3):
        lo_q = lo[:, q:q + 1]
        hi_q = hi[:, q:q + 1]                                       # (P, 1)
        in_q = jnp.logical_and(clouds[q:q + 1, :] >= lo_q,
                               clouds[q:q + 1, :] < hi_q)           # (P, N)
        valid = jnp.logical_and(valid, jnp.logical_or(hi_q == 0.0, in_q))

    pos = pres > 0.0                                                # (1, N)
    on = jnp.logical_and(valid, pos)                                # (P, N)
    off = jnp.logical_and(valid, jnp.logical_not(pos))
    mask_ref[0] = valid.astype(jnp.float32)
    on_ref[0] = on.astype(jnp.float32)
    off_ref[0] = off.astype(jnp.float32)

    # Masked max-pool of plane_feature over the on/off point subsets, vectorized
    # over all planes at once: (P, d, N) -> (P, d).
    h2b = h2[None, :, :]
    onf = jnp.max(jnp.where(on[:, None, :], h2b, neg), axis=2)      # (P, d)
    offf = jnp.max(jnp.where(off[:, None, :], h2b, neg), axis=2)    # (P, d)
    n_val = jnp.sum(valid.astype(jnp.float32), axis=1, keepdims=True)   # (P, 1)
    n_on = jnp.sum(on.astype(jnp.float32), axis=1, keepdims=True)
    n_off = jnp.sum(off.astype(jnp.float32), axis=1, keepdims=True)
    onf = jnp.where(n_on > 0.0, onf, 0.0)                           # empty subset -> 0 (host glue uses counts)
    offf = jnp.where(n_off > 0.0, offf, 0.0)

    # Single lane-dense (P, SLAB_W) write-back:
    #   [0:d) on_feat | [d:2d) off_feat | 2d: n_valid | 2d+1: n_on | 2d+2: n_off | zero pad
    d = onf.shape[1]
    pad = jnp.zeros((onf.shape[0], SLAB_W - (2 * d + 3)), jnp.float32)
    slab_ref[0] = jnp.concatenate([onf, offf, n_val, n_on, n_off, pad], axis=1)


def make_plane_refine(n_rooms=N_ROOMS, n_pts=N_PTS, n_planes=N_PLANES, d=D_IN):
    c2 = 2 * d

    def room(*dims):
        n = len(dims)
        return pl.BlockSpec((1,) + dims, lambda r, _n=n: (r,) + (0,) * _n)

    def shared(*dims):
        n = len(dims)
        return pl.BlockSpec(dims, lambda r, _n=n: (0,) * _n)

    in_specs = [
        room(c2, n_pts),          # room feature (feature ++ feature_geo), channels-first
        room(3, n_pts),           # room clouds, coords-first
        room(n_planes, 12),       # per-plane [center | normal | xyz_min | xyz_max]
        shared(d, c2), shared(d, 1), shared(d, 1),   # fc1: W, folded-BN scale, bias
        shared(d, d), shared(d, 1), shared(d, 1),    # fc2
        shared(1, d), shared(1, 1),                  # fc3: W, bias
    ]
    out_specs = [
        room(1, n_pts),           # plane_result per point (post-ReLU), plane-invariant
        room(n_planes, n_pts),    # nearby-plane validity mask
        room(n_planes, n_pts),    # on-plane mask
        room(n_planes, n_pts),    # off-plane mask
        room(n_planes, SLAB_W),   # packed [on_feat | off_feat | counts | pad]
    ]
    out_shape = [
        jax.ShapeDtypeStruct((n_rooms, 1, n_pts), jnp.float32),
        jax.ShapeDtypeStruct((n_rooms, n_planes, n_pts), jnp.float32),
        jax.ShapeDtypeStruct((n_rooms, n_planes, n_pts), jnp.float32),
        jax.ShapeDtypeStruct((n_rooms, n_planes, n_pts), jnp.float32),
        jax.ShapeDtypeStruct((n_rooms, n_planes, SLAB_W), jnp.float32),
    ]
    return pl.pallas_call(
        plane_refine_kernel,
        out_shape=out_shape,
        grid_spec=pltpu.PrefetchScalarGridSpec(
            num_scalar_prefetch=0,
            grid=(n_rooms,),
            in_specs=in_specs,
            out_specs=out_specs,
        ),
        compiler_params=pltpu.CompilerParams(
            dimension_semantics=("parallel",)),   # rooms are independent
    )


def init_params(key):
    ks = jax.random.split(key, 12)
    nrm = lambda k, s, sc=0.1: (sc * jax.random.normal(k, s)).astype(jnp.float32)

    def bn_fold(kg, kb, km, kv, c):          # eval-mode BN folded to scale/bias, (c, 1)
        gamma = 1.0 + nrm(kg, (c, 1))
        beta = nrm(kb, (c, 1))
        mean = nrm(km, (c, 1))
        var = 1.0 + 0.1 * jax.random.uniform(kv, (c, 1))
        scale = gamma / jnp.sqrt(var + 1e-5)
        return scale.astype(jnp.float32), (beta - mean * scale).astype(jnp.float32)

    c2 = 2 * D_IN
    W1 = nrm(ks[0], (D_IN, c2));  s1, b1 = bn_fold(ks[1], ks[2], ks[3], ks[4], D_IN)
    W2 = nrm(ks[5], (D_IN, D_IN)); s2, b2 = bn_fold(ks[6], ks[7], ks[8], ks[9], D_IN)
    W3 = nrm(ks[10], (1, D_IN));  b3 = nrm(ks[11], (1, 1))
    return (W1, s1, b1, W2, s2, b2, W3, b3)


def numpy_reference(clouds, feat_cn, planes, params):
    """Per-room NumPy reference of Plane_refine_block.get_nearby_plane_points."""
    W1, s1, b1, W2, s2, b2, W3, b3 = params
    relu = lambda x: np.maximum(x, 0.0)
    h1 = relu(W1 @ feat_cn * s1 + b1)                  # (d, N)
    h2 = relu(W2 @ h1 * s2 + b2)                       # (d, N)  plane_feature
    pres_pre = (W3 @ h2 + b3)[0]                       # (N,)
    pres = relu(pres_pre)                              # plane_result
    out = {"pres": pres, "pres_pre": pres_pre, "planes": []}
    d = h2.shape[0]
    for i in range(planes.shape[0]):
        center, normal = planes[i, 0:3], planes[i, 3:6]
        lo, hi = planes[i, 6:9], planes[i, 9:12]
        rng = np.ones(clouds.shape[0], bool)
        for q in np.where(hi != 0.0)[0][:2]:           # original: first two nonzero coords
            rng &= (clouds[:, q] >= lo[q]) & (clouds[:, q] < hi[q])
        dist = np.abs((clouds - center) @ normal)
        mask = (dist < DIST_THR) & rng
        on = mask & (pres_pre > 0.0)                   # sigmoid(relu(x)) > 0.5  <=>  x > 0
        off = mask & ~(pres_pre > 0.0)
        onf = h2[:, on].max(axis=1) if on.any() else np.zeros(d, np.float32)
        offf = h2[:, off].max(axis=1) if off.any() else np.zeros(d, np.float32)
        out["planes"].append(dict(mask=mask, dist=dist, on=on, off=off, onf=onf, offf=offf))
    return out


if __name__ == "__main__":
    root = jax.random.PRNGKey(0)
    kp, kd = jax.random.split(root)
    params = init_params(kp)
    dk = jax.random.split(kd, 4)

    # ---- synthetic inputs (shapes implied by the module's forward) ----
    xyz = jax.random.uniform(dk[0], (N_ROOMS, N_PTS, 3), minval=-1.0, maxval=1.0)
    centers = 0.5 * jax.random.normal(dk[1], (N_ROOMS, 1, 3))
    feature = 0.1 * jax.random.normal(dk[2], (N_ROOMS, D_IN, N_PTS))
    feature_geo = 0.1 * jax.random.normal(dk[3], (N_ROOMS, D_IN, N_PTS))
    room_feature = jnp.concatenate([feature, feature_geo], axis=1).astype(jnp.float32)
    clouds = (xyz + centers).astype(jnp.float32)                  # (B, N, 3) room_clouds
    clouds_np = np.asarray(clouds)

    # synthetic per-room "CSV" planes: axis-aligned through the median point
    planes_np = np.zeros((N_ROOMS, N_PLANES, 12), np.float32)
    for i in range(N_ROOMS):
        for p in range(N_PLANES):
            normal = np.zeros(3, np.float32); normal[p] = 1.0
            center = np.zeros(3, np.float32)
            center[p] = np.median(clouds_np[i, :, p])
            lo = np.zeros(3, np.float32); hi = np.zeros(3, np.float32)
            for q in range(3):
                if q != p:
                    lo[q], hi[q] = -10.0, 10.0
            planes_np[i, p] = np.concatenate([center, normal, lo, hi])
    planes = jnp.asarray(planes_np)

    plane_call = make_plane_refine()

    @jax.jit
    def run(feat_cn, clouds_bn3, planes_b, prm):
        clouds_cn = jnp.transpose(clouds_bn3, (0, 2, 1))          # (B, 3, N) lane-dense
        return plane_call(feat_cn, clouds_cn, planes_b, *prm)

    outs = run(room_feature, clouds, planes, params)
    jax.block_until_ready(outs)
    pres_k, mask_k, on_k, off_k, slab_k = [np.asarray(o) for o in outs]

    # ---- check against the NumPy reference ----
    params_np = [np.asarray(p, np.float32) for p in params]
    feat_np = np.asarray(room_feature)
    ok = True
    compared = 0
    for i in range(N_ROOMS):
        ref = numpy_reference(clouds_np[i], feat_np[i], planes_np[i], params_np)
        np.testing.assert_allclose(pres_k[i, 0], ref["pres"], rtol=2e-2, atol=5e-3)
        for p in range(N_PLANES):
            rp = ref["planes"][p]
            mk = mask_k[i, p] > 0.5
            guard = np.abs(rp["dist"] - DIST_THR) > 1e-4          # ignore fp-boundary points
            if not np.array_equal(mk[guard], rp["mask"][guard]):
                ok = False
                continue
            if rp["mask"].sum() <= 1:                             # PyTorch skips planes w/ <2 pts
                continue
            on_m = on_k[i, p] > 0.5
            off_m = off_k[i, p] > 0.5
            safe = guard & (np.abs(ref["pres_pre"]) > 1e-2)       # away from the sigmoid boundary
            if not (np.array_equal(on_m[safe], rp["on"][safe]) and
                    np.array_equal(off_m[safe], rp["off"][safe])):
                ok = False
                continue
            if np.array_equal(mk, rp["mask"]) and np.array_equal(on_m, rp["on"]):
                np.testing.assert_allclose(slab_k[i, p, :D_IN], rp["onf"],
                                           rtol=2e-2, atol=5e-3)
                np.testing.assert_allclose(slab_k[i, p, D_IN:2 * D_IN], rp["offf"],
                                           rtol=2e-2, atol=5e-3)
                compared += 1

    # glue: assemble room_result-style dicts (variable-length idx / feature lists)
    # TODO(synk): label_list comes from the CSV and is not synthesized here.
    idx = np.arange(N_PTS)
    room_list = []
    for i in range(N_ROOMS):
        room_result = {k: [] for k in
                       ("on_plane_idx_list", "off_plane_idx_list",
                        "on_plane_feature_list", "off_plane_feature_list",
                        "plane_result_list", "mask")}
        for p in range(N_PLANES):
            if int(slab_k[i, p, 2 * D_IN]) <= 1:
                continue
            mk = mask_k[i, p] > 0.5
            room_result["mask"].append(mk)
            room_result["plane_result_list"].append(pres_k[i, 0, mk])
            for name, msk_a, sl in (("on", on_k, slice(0, D_IN)),
                                    ("off", off_k, slice(D_IN, 2 * D_IN))):
                sel = msk_a[i, p] > 0.5
                if sel.sum() > 0:
                    room_result[f"{name}_plane_idx_list"].append(idx[sel])
                    room_result[f"{name}_plane_feature_list"].append(
                        slab_k[i, p, sl].reshape(1, D_IN, 1, 1))
                else:
                    room_result[f"{name}_plane_idx_list"].append([])
                    room_result[f"{name}_plane_feature_list"].append([])
        room_list.append(room_result)

    if ok and compared > 0:
        print("KERNEL_OK")
</pallas_src>

<mosaic_0001>
module attributes {stable_mosaic.version = 11 : i64} {
  func.func @plane_refine_kernel(%arg0: i32, %arg1: memref<1x64x128xf32, #tpu.memory_space<vmem>>, %arg2: memref<1x3x128xf32, #tpu.memory_space<vmem>>, %arg3: memref<1x3x12xf32, #tpu.memory_space<vmem>>, %arg4: memref<32x64xf32, #tpu.memory_space<vmem>>, %arg5: memref<32x1xf32, #tpu.memory_space<vmem>>, %arg6: memref<32x1xf32, #tpu.memory_space<vmem>>, %arg7: memref<32x32xf32, #tpu.memory_space<vmem>>, %arg8: memref<32x1xf32, #tpu.memory_space<vmem>>, %arg9: memref<32x1xf32, #tpu.memory_space<vmem>>, %arg10: memref<1x32xf32, #tpu.memory_space<vmem>>, %arg11: memref<1x1xf32, #tpu.memory_space<vmem>>, %arg12: memref<1x1x128xf32, #tpu.memory_space<vmem>>, %arg13: memref<1x3x128xf32, #tpu.memory_space<vmem>>, %arg14: memref<1x3x128xf32, #tpu.memory_space<vmem>>, %arg15: memref<1x3x128xf32, #tpu.memory_space<vmem>>, %arg16: memref<1x3x128xf32, #tpu.memory_space<vmem>>) attributes {dimension_semantics = [#tpu.dimension_semantics<parallel>], iteration_bounds = array<i64: 2>, scalar_prefetch = 0 : i64, scratch_operands = 0 : i64, tpu.core_type = #tpu.core_type<tc>, window_params = [{transform_indices = @transform_0, window_bounds = array<i64: 1, 64, 128>}, {transform_indices = @transform_1, window_bounds = array<i64: 1, 3, 128>}, {transform_indices = @transform_2, window_bounds = array<i64: 1, 3, 12>}, {pipeline_mode = #tpu.pipeline_mode<synchronous>, transform_indices = @transform_3, window_bounds = array<i64: 32, 64>}, {pipeline_mode = #tpu.pipeline_mode<synchronous>, transform_indices = @transform_4, window_bounds = array<i64: 32, 1>}, {pipeline_mode = #tpu.pipeline_mode<synchronous>, transform_indices = @transform_5, window_bounds = array<i64: 32, 1>}, {pipeline_mode = #tpu.pipeline_mode<synchronous>, transform_indices = @transform_6, window_bounds = array<i64: 32, 32>}, {pipeline_mode = #tpu.pipeline_mode<synchronous>, transform_indices = @transform_7, window_bounds = array<i64: 32, 1>}, {pipeline_mode = #tpu.pipeline_mode<synchronous>, transform_indices = @transform_8, window_bounds = array<i64: 32, 1>}, {pipeline_mode = #tpu.pipeline_mode<synchronous>, transform_indices = @transform_9, window_bounds = array<i64: 1, 32>}, {pipeline_mode = #tpu.pipeline_mode<synchronous>, transform_indices = @transform_10, window_bounds = array<i64: 1, 1>}, {transform_indices = @transform_11, window_bounds = array<i64: 1, 1, 128>}, {transform_indices = @transform_12, window_bounds = array<i64: 1, 3, 128>}, {transform_indices = @transform_13, window_bounds = array<i64: 1, 3, 128>}, {transform_indices = @transform_14, window_bounds = array<i64: 1, 3, 128>}, {transform_indices = @transform_15, window_bounds = array<i64: 1, 3, 128>}]} {
    %c0 = arith.constant 0 : index
    %c0_0 = arith.constant 0 : index
    %c0_1 = arith.constant 0 : index
    %0 = vector.load %arg1[%c0, %c0_0, %c0_1] : memref<1x64x128xf32, #tpu.memory_space<vmem>>, vector<1x64x128xf32>
    %1 = vector.shape_cast %0 : vector<1x64x128xf32> to vector<64x128xf32>
    %c0_2 = arith.constant 0 : index
    %c0_3 = arith.constant 0 : index
    %c0_4 = arith.constant 0 : index
    %2 = vector.load %arg2[%c0_2, %c0_3, %c0_4] : memref<1x3x128xf32, #tpu.memory_space<vmem>>, vector<1x3x128xf32>
    %3 = vector.shape_cast %2 : vector<1x3x128xf32> to vector<3x128xf32>
    %c0_5 = arith.constant 0 : index
    %c0_6 = arith.constant 0 : index
    %c0_7 = arith.constant 0 : index
    %4 = vector.load %arg3[%c0_5, %c0_6, %c0_7] : memref<1x3x12xf32, #tpu.memory_space<vmem>>, vector<1x3x12xf32>
    %5 = vector.shape_cast %4 : vector<1x3x12xf32> to vector<3x12xf32>
    %c0_8 = arith.constant 0 : index
    %c0_9 = arith.constant 0 : index
    %6 = vector.load %arg4[%c0_8, %c0_9] : memref<32x64xf32, #tpu.memory_space<vmem>>, vector<32x64xf32>
    %cst = arith.constant dense<0.000000e+00> : vector<32x128xf32>
    %7 = tpu.matmul %6, %1, %cst {dimension_numbers = #tpu.dot_dimension_numbers<[1], [0], [0], [1], [0, 0, 1, 1], [], []>} : vector<32x64xf32>, vector<64x128xf32>, vector<32x128xf32> -> vector<32x128xf32>
    %c0_10 = arith.constant 0 : index
    %c0_11 = arith.constant 0 : index
    %8 = vector.load %arg5[%c0_10, %c0_11] : memref<32x1xf32, #tpu.memory_space<vmem>>, vector<32x1xf32>
    %9 = vector.broadcast %8 : vector<32x1xf32> to vector<32x128xf32>
    %10 = arith.mulf %7, %9 : vector<32x128xf32>
    %c0_12 = arith.constant 0 : index
    %c0_13 = arith.constant 0 : index
    %11 = vector.load %arg6[%c0_12, %c0_13] : memref<32x1xf32, #tpu.memory_space<vmem>>, vector<32x1xf32>
    %12 = vector.broadcast %11 : vector<32x1xf32> to vector<32x128xf32>
    %13 = arith.addf %10, %12 : vector<32x128xf32>
    %cst_14 = arith.constant 0.000000e+00 : f32
    %14 = vector.broadcast %cst_14 : f32 to vector<32x128xf32>
    %15 = arith.maximumf %13, %14 : vector<32x128xf32>
    %c0_15 = arith.constant 0 : index
    %c0_16 = arith.constant 0 : index
    %16 = vector.load %arg7[%c0_15, %c0_16] : memref<32x32xf32, #tpu.memory_space<vmem>>, vector<32x32xf32>
    %cst_17 = arith.constant dense<0.000000e+00> : vector<32x128xf32>
    %17 = tpu.matmul %16, %15, %cst_17 {dimension_numbers = #tpu.dot_dimension_numbers<[1], [0], [0], [1], [0, 0, 1, 1], [], []>} : vector<32x32xf32>, vector<32x128xf32>, vector<32x128xf32> -> vector<32x128xf32>
    %c0_18 = arith.constant 0 : index
    %c0_19 = arith.constant 0 : index
    %18 = vector.load %arg8[%c0_18, %c0_19] : memref<32x1xf32, #tpu.memory_space<vmem>>, vector<32x1xf32>
    %19 = vector.broadcast %18 : vector<32x1xf32> to vector<32x128xf32>
    %20 = arith.mulf %17, %19 : vector<32x128xf32>
    %c0_20 = arith.constant 0 : index
    %c0_21 = arith.constant 0 : index
    %21 = vector.load %arg9[%c0_20, %c0_21] : memref<32x1xf32, #tpu.memory_space<vmem>>, vector<32x1xf32>
    %22 = vector.broadcast %21 : vector<32x1xf32> to vector<32x128xf32>
    %23 = arith.addf %20, %22 : vector<32x128xf32>
    %cst_22 = arith.constant 0.000000e+00 : f32
    %24 = vector.broadcast %cst_22 : f32 to vector<32x128xf32>
    %25 = arith.maximumf %23, %24 : vector<32x128xf32>
    %c0_23 = arith.constant 0 : index
    %c0_24 = arith.constant 0 : index
    %26 = vector.load %arg10[%c0_23, %c0_24] : memref<1x32xf32, #tpu.memory_space<vmem>>, vector<1x32xf32>
    %cst_25 = arith.constant dense<0.000000e+00> : vector<1x128xf32>
    %27 = tpu.matmul %26, %25, %cst_25 {dimension_numbers = #tpu.dot_dimension_numbers<[1], [0], [0], [1], [0, 0, 1, 1], [], []>} : vector<1x32xf32>, vector<32x128xf32>, vector<1x128xf32> -> vector<1x128xf32>
    %c0_26 = arith.constant 0 : index
    %c0_27 = arith.constant 0 : index
    %28 = vector.load %arg11[%c0_26, %c0_27] : memref<1x1xf32, #tpu.memory_space<vmem>>, vector<1x1xf32>
    %29 = vector.broadcast %28 : vector<1x1xf32> to vector<1x128xf32>
    %30 = arith.addf %27, %29 : vector<1x128xf32>
    %cst_28 = arith.constant 0.000000e+00 : f32
    %31 = vector.broadcast %cst_28 : f32 to vector<1x128xf32>
    %32 = arith.maximumf %30, %31 : vector<1x128xf32>
    %c0_29 = arith.constant 0 : index
    %c0_30 = arith.constant 0 : index
    %c0_31 = arith.constant 0 : index
    %33 = vector.load %arg12[%c0_29, %c0_30, %c0_31] : memref<1x1x128xf32, #tpu.memory_space<vmem>>, vector<1x1x128xf32>
    %34 = vector.shape_cast %33 : vector<1x1x128xf32> to vector<1x128xf32>
    %35 = vector.shape_cast %32 : vector<1x128xf32> to vector<1x1x128xf32>
    tpu.vector_store %arg12[%c0_29, %c0_30, %c0_31], %35 {strides = array<i32>} : memref<1x1x128xf32, #tpu.memory_space<vmem>>, vector<1x1x128xf32>,
    %36 = vector.extract_strided_slice %5 {offsets = [0, 0], sizes = [3, 3], strides = [1, 1]} : vector<3x12xf32> to vector<3x3xf32>
    %37 = vector.extract_strided_slice %5 {offsets = [0, 3], sizes = [3, 3], strides = [1, 1]} : vector<3x12xf32> to vector<3x3xf32>
    %38 = vector.extract_strided_slice %5 {offsets = [0, 6], sizes = [3, 3], strides = [1, 1]} : vector<3x12xf32> to vector<3x3xf32>
    %39 = vector.extract_strided_slice %5 {offsets = [0, 9], sizes = [3, 3], strides = [1, 1]} : vector<3x12xf32> to vector<3x3xf32>
    %40 = vector.extract_strided_slice %37 {offsets = [0, 0], sizes = [3, 1], strides = [1, 1]} : vector<3x3xf32> to vector<3x1xf32>
    %41 = vector.extract_strided_slice %3 {offsets = [0, 0], sizes = [1, 128], strides = [1, 1]} : vector<3x128xf32> to vector<1x128xf32>
    %42 = vector.broadcast %40 : vector<3x1xf32> to vector<3x128xf32>
    %43 = vector.broadcast %41 : vector<1x128xf32> to vector<3x128xf32>
    %44 = arith.mulf %42, %43 : vector<3x128xf32>
    %45 = vector.extract_strided_slice %37 {offsets = [0, 1], sizes = [3, 1], strides = [1, 1]} : vector<3x3xf32> to vector<3x1xf32>
    %46 = vector.extract_strided_slice %3 {offsets = [1, 0], sizes = [1, 128], strides = [1, 1]} : vector<3x128xf32> to vector<1x128xf32>
    %47 = vector.broadcast %45 : vector<3x1xf32> to vector<3x128xf32>
    %48 = vector.broadcast %46 : vector<1x128xf32> to vector<3x128xf32>
    %49 = arith.mulf %47, %48 : vector<3x128xf32>
    %50 = arith.addf %44, %49 : vector<3x128xf32>
    %51 = vector.extract_strided_slice %37 {offsets = [0, 2], sizes = [3, 1], strides = [1, 1]} : vector<3x3xf32> to vector<3x1xf32>
    %52 = vector.extract_strided_slice %3 {offsets = [2, 0], sizes = [1, 128], strides = [1, 1]} : vector<3x128xf32> to vector<1x128xf32>
    %53 = vector.broadcast %51 : vector<3x1xf32> to vector<3x128xf32>
    %54 = vector.broadcast %52 : vector<1x128xf32> to vector<3x128xf32>
    %55 = arith.mulf %53, %54 : vector<3x128xf32>
    %56 = arith.addf %50, %55 : vector<3x128xf32>
    %57 = vector.extract_strided_slice %36 {offsets = [0, 0], sizes = [3, 1], strides = [1, 1]} : vector<3x3xf32> to vector<3x1xf32>
    %58 = vector.extract_strided_slice %37 {offsets = [0, 0], sizes = [3, 1], strides = [1, 1]} : vector<3x3xf32> to vector<3x1xf32>
    %59 = arith.mulf %57, %58 : vector<3x1xf32>
    %60 = vector.extract_strided_slice %36 {offsets = [0, 1], sizes = [3, 1], strides = [1, 1]} : vector<3x3xf32> to vector<3x1xf32>
    %61 = vector.extract_strided_slice %37 {offsets = [0, 1], sizes = [3, 1], strides = [1, 1]} : vector<3x3xf32> to vector<3x1xf32>
    %62 = arith.mulf %60, %61 : vector<3x1xf32>
    %63 = arith.addf %59, %62 : vector<3x1xf32>
    %64 = vector.extract_strided_slice %36 {offsets = [0, 2], sizes = [3, 1], strides = [1, 1]} : vector<3x3xf32> to vector<3x1xf32>
    %65 = vector.extract_strided_slice %37 {offsets = [0, 2], sizes = [3, 1], strides = [1, 1]} : vector<3x3xf32> to vector<3x1xf32>
    %66 = arith.mulf %64, %65 : vector<3x1xf32>
    %67 = arith.addf %63, %66 : vector<3x1xf32>
    %68 = vector.broadcast %67 : vector<3x1xf32> to vector<3x128xf32>
    %69 = arith.subf %56, %68 : vector<3x128xf32>
    %70 = math.absf %69 : vector<3x128xf32>
    %cst_32 = arith.constant 1.000000e-01 : f32
    %71 = vector.broadcast %cst_32 : f32 to vector<3x128xf32>
    %72 = arith.cmpf olt, %70, %71 : vector<3x128xf32>
    %73 = vector.extract_strided_slice %38 {offsets = [0, 0], sizes = [3, 1], strides = [1, 1]} : vector<3x3xf32> to vector<3x1xf32>
    %74 = vector.extract_strided_slice %39 {offsets = [0, 0], sizes = [3, 1], strides = [1, 1]} : vector<3x3xf32> to vector<3x1xf32>
    %75 = vector.extract_strided_slice %3 {offsets = [0, 0], sizes = [1, 128], strides = [1, 1]} : vector<3x128xf32> to vector<1x128xf32>
    %76 = vector.broadcast %75 : vector<1x128xf32> to vector<3x128xf32>
    %77 = vector.broadcast %73 : vector<3x1xf32> to vector<3x128xf32>
    %78 = arith.cmpf oge, %76, %77 : vector<3x128xf32>
    %79 = vector.extract_strided_slice %3 {offsets = [0, 0], sizes = [1, 128], strides = [1, 1]} : vector<3x128xf32> to vector<1x128xf32>
    %80 = vector.broadcast %79 : vector<1x128xf32> to vector<3x128xf32>
    %81 = vector.broadcast %74 : vector<3x1xf32> to vector<3x128xf32>
    %82 = arith.cmpf olt, %80, %81 : vector<3x128xf32>
    %83 = arith.andi %78, %82 : vector<3x128xi1>
    %cst_33 = arith.constant 0.000000e+00 : f32
    %84 = vector.broadcast %cst_33 : f32 to vector<3x1xf32>
    %85 = arith.cmpf oeq, %74, %84 : vector<3x1xf32>
    %86 = vector.broadcast %85 : vector<3x1xi1> to vector<3x128xi1>
    %87 = arith.ori %86, %83 : vector<3x128xi1>
    %88 = arith.andi %72, %87 : vector<3x128xi1>
    %89 = vector.extract_strided_slice %38 {offsets = [0, 1], sizes = [3, 1], strides = [1, 1]} : vector<3x3xf32> to vector<3x1xf32>
    %90 = vector.extract_strided_slice %39 {offsets = [0, 1], sizes = [3, 1], strides = [1, 1]} : vector<3x3xf32> to vector<3x1xf32>
    %91 = vector.extract_strided_slice %3 {offsets = [1, 0], sizes = [1, 128], strides = [1, 1]} : vector<3x128xf32> to vector<1x128xf32>
    %92 = vector.broadcast %91 : vector<1x128xf32> to vector<3x128xf32>
    %93 = vector.broadcast %89 : vector<3x1xf32> to vector<3x128xf32>
    %94 = arith.cmpf oge, %92, %93 : vector<3x128xf32>
    %95 = vector.extract_strided_slice %3 {offsets = [1, 0], sizes = [1, 128], strides = [1, 1]} : vector<3x128xf32> to vector<1x128xf32>
    %96 = vector.broadcast %95 : vector<1x128xf32> to vector<3x128xf32>
    %97 = vector.broadcast %90 : vector<3x1xf32> to vector<3x128xf32>
    %98 = arith.cmpf olt, %96, %97 : vector<3x128xf32>
    %99 = arith.andi %94, %98 : vector<3x128xi1>
    %cst_34 = arith.constant 0.000000e+00 : f32
    %100 = vector.broadcast %cst_34 : f32 to vector<3x1xf32>
    %101 = arith.cmpf oeq, %90, %100 : vector<3x1xf32>
    %102 = vector.broadcast %101 : vector<3x1xi1> to vector<3x128xi1>
    %103 = arith.ori %102, %99 : vector<3x128xi1>
    %104 = arith.andi %88, %103 : vector<3x128xi1>
    %105 = vector.extract_strided_slice %38 {offsets = [0, 2], sizes = [3, 1], strides = [1, 1]} : vector<3x3xf32> to vector<3x1xf32>
    %106 = vector.extract_strided_slice %39 {offsets = [0, 2], sizes = [3, 1], strides = [1, 1]} : vector<3x3xf32> to vector<3x1xf32>
    %107 = vector.extract_strided_slice %3 {offsets = [2, 0], sizes = [1, 128], strides = [1, 1]} : vector<3x128xf32> to vector<1x128xf32>
    %108 = vector.broadcast %107 : vector<1x128xf32> to vector<3x128xf32>
    %109 = vector.broadcast %105 : vector<3x1xf32> to vector<3x128xf32>
    %110 = arith.cmpf oge, %108, %109 : vector<3x128xf32>
    %111 = vector.extract_strided_slice %3 {offsets = [2, 0], sizes = [1, 128], strides = [1, 1]} : vector<3x128xf32> to vector<1x128xf32>
    %112 = vector.broadcast %111 : vector<1x128xf32> to vector<3x128xf32>
    %113 = vector.broadcast %106 : vector<3x1xf32> to vector<3x128xf32>
    %114 = arith.cmpf olt, %112, %113 : vector<3x128xf32>
    %115 = arith.andi %110, %114 : vector<3x128xi1>
    %cst_35 = arith.constant 0.000000e+00 : f32
    %116 = vector.broadcast %cst_35 : f32 to vector<3x1xf32>
    %117 = arith.cmpf oeq, %106, %116 : vector<3x1xf32>
    %118 = vector.broadcast %117 : vector<3x1xi1> to vector<3x128xi1>
    %119 = arith.ori %118, %115 : vector<3x128xi1>
    %120 = arith.andi %104, %119 : vector<3x128xi1>
    %cst_36 = arith.constant 0.000000e+00 : f32
    %121 = vector.broadcast %cst_36 : f32 to vector<1x128xf32>
    %122 = arith.cmpf ogt, %32, %121 : vector<1x128xf32>
    %123 = vector.broadcast %122 : vector<1x128xi1> to vector<3x128xi1>
    %124 = arith.andi %120, %123 : vector<3x128xi1>
    %cst_37 = arith.constant dense<true> : vector<1x128xi1>
    %125 = arith.xori %122, %cst_37 : vector<1x128xi1>
    %126 = vector.broadcast %125 : vector<1x128xi1> to vector<3x128xi1>
    %127 = arith.andi %120, %126 : vector<3x128xi1>
    %128 = arith.extui %120 : vector<3x128xi1> to vector<3x128xi32>
    %129 = arith.sitofp %128 : vector<3x128xi32> to vector<3x128xf32>
    %c0_38 = arith.constant 0 : index
    %c0_39 = arith.constant 0 : index
    %c0_40 = arith.constant 0 : index
    %130 = vector.load %arg13[%c0_38, %c0_39, %c0_40] : memref<1x3x128xf32, #tpu.memory_space<vmem>>, vector<1x3x128xf32>
    %131 = vector.shape_cast %130 : vector<1x3x128xf32> to vector<3x128xf32>
    %132 = vector.shape_cast %129 : vector<3x128xf32> to vector<1x3x128xf32>
    tpu.vector_store %arg13[%c0_38, %c0_39, %c0_40], %132 {strides = array<i32>} : memref<1x3x128xf32, #tpu.memory_space<vmem>>, vector<1x3x128xf32>,
    %133 = arith.extui %124 : vector<3x128xi1> to vector<3x128xi32>
    %134 = arith.sitofp %133 : vector<3x128xi32> to vector<3x128xf32>
    %c0_41 = arith.constant 0 : index
    %c0_42 = arith.constant 0 : index
    %c0_43 = arith.constant 0 : index
    %135 = vector.load %arg14[%c0_41, %c0_42, %c0_43] : memref<1x3x128xf32, #tpu.memory_space<vmem>>, vector<1x3x128xf32>
    %136 = vector.shape_cast %135 : vector<1x3x128xf32> to vector<3x128xf32>
    %137 = vector.shape_cast %134 : vector<3x128xf32> to vector<1x3x128xf32>
    tpu.vector_store %arg14[%c0_41, %c0_42, %c0_43], %137 {strides = array<i32>} : memref<1x3x128xf32, #tpu.memory_space<vmem>>, vector<1x3x128xf32>,
    %138 = arith.extui %127 : vector<3x128xi1> to vector<3x128xi32>
    %139 = arith.sitofp %138 : vector<3x128xi32> to vector<3x128xf32>
    %c0_44 = arith.constant 0 : index
    %c0_45 = arith.constant 0 : index
    %c0_46 = arith.constant 0 : index
    %140 = vector.load %arg15[%c0_44, %c0_45, %c0_46] : memref<1x3x128xf32, #tpu.memory_space<vmem>>, vector<1x3x128xf32>
    %141 = vector.shape_cast %140 : vector<1x3x128xf32> to vector<3x128xf32>
    %142 = vector.shape_cast %139 : vector<3x128xf32> to vector<1x3x128xf32>
    tpu.vector_store %arg15[%c0_44, %c0_45, %c0_46], %142 {strides = array<i32>} : memref<1x3x128xf32, #tpu.memory_space<vmem>>, vector<1x3x128xf32>,
    %143 = vector.shape_cast %25 : vector<32x128xf32> to vector<1x32x128xf32>
    %144 = vector.shape_cast %124 : vector<3x128xi1> to vector<3x1x128xi1>
    %cst_47 = arith.constant -1.000000e+30 : f32
    %145 = vector.shape_cast %144 : vector<3x1x128xi1> to vector<3x1x128xi1>
    %146 = vector.broadcast %145 : vector<3x1x128xi1> to vector<3x32x128xi1>
    %147 = vector.shape_cast %143 : vector<1x32x128xf32> to vector<1x32x128xf32>
    %148 = vector.broadcast %147 : vector<1x32x128xf32> to vector<3x32x128xf32>
    %149 = vector.broadcast %cst_47 : f32 to vector<3x32x128xf32>
    %150 = arith.select %146, %148, %149 : vector<3x32x128xi1>, vector<3x32x128xf32>
    %cst_48 = arith.constant dense<0xFF800000> : vector<3x32xf32>
    %151 = vector.multi_reduction <maximumf>, %150, %cst_48 [2] : vector<3x32x128xf32> to vector<3x32xf32>
    %152 = vector.shape_cast %127 : vector<3x128xi1> to vector<3x1x128xi1>
    %cst_49 = arith.constant -1.000000e+30 : f32
    %153 = vector.shape_cast %152 : vector<3x1x128xi1> to vector<3x1x128xi1>
    %154 = vector.broadcast %153 : vector<3x1x128xi1> to vector<3x32x128xi1>
    %155 = vector.shape_cast %143 : vector<1x32x128xf32> to vector<1x32x128xf32>
    %156 = vector.broadcast %155 : vector<1x32x128xf32> to vector<3x32x128xf32>
    %157 = vector.broadcast %cst_49 : f32 to vector<3x32x128xf32>
    %158 = arith.select %154, %156, %157 : vector<3x32x128xi1>, vector<3x32x128xf32>
    %cst_50 = arith.constant dense<0xFF800000> : vector<3x32xf32>
    %159 = vector.multi_reduction <maximumf>, %158, %cst_50 [2] : vector<3x32x128xf32> to vector<3x32xf32>
    %160 = arith.extui %120 : vector<3x128xi1> to vector<3x128xi32>
    %161 = arith.sitofp %160 : vector<3x128xi32> to vector<3x128xf32>
    %cst_51 = arith.constant dense<0.000000e+00> : vector<3xf32>
    %162 = vector.multi_reduction <add>, %161, %cst_51 [1] : vector<3x128xf32> to vector<3xf32>
    %163 = vector.shape_cast %162 : vector<3xf32> to vector<3x1xf32>
    %164 = arith.extui %124 : vector<3x128xi1> to vector<3x128xi32>
    %165 = arith.sitofp %164 : vector<3x128xi32> to vector<3x128xf32>
    %cst_52 = arith.constant dense<0.000000e+00> : vector<3xf32>
    %166 = vector.multi_reduction <add>, %165, %cst_52 [1] : vector<3x128xf32> to vector<3xf32>
    %167 = vector.shape_cast %166 : vector<3xf32> to vector<3x1xf32>
    %168 = arith.extui %127 : vector<3x128xi1> to vector<3x128xi32>
    %169 = arith.sitofp %168 : vector<3x128xi32> to vector<3x128xf32>
    %cst_53 = arith.constant dense<0.000000e+00> : vector<3xf32>
    %170 = vector.multi_reduction <add>, %169, %cst_53 [1] : vector<3x128xf32> to vector<3xf32>
    %171 = vector.shape_cast %170 : vector<3xf32> to vector<3x1xf32>
    %cst_54 = arith.constant 0.000000e+00 : f32
    %172 = vector.broadcast %cst_54 : f32 to vector<3x1xf32>
    %173 = arith.cmpf ogt, %167, %172 : vector<3x1xf32>
    %cst_55 = arith.constant 0.000000e+00 : f32
    %174 = vector.shape_cast %173 : vector<3x1xi1> to vector<3x1xi1>
    %175 = vector.broadcast %174 : vector<3x1xi1> to vector<3x32xi1>
    %176 = vector.broadcast %cst_55 : f32 to vector<3x32xf32>
    %177 = arith.select %175, %151, %176 : vector<3x32xi1>, vector<3x32xf32>
    %cst_56 = arith.constant 0.000000e+00 : f32
    %178 = vector.broadcast %cst_56 : f32 to vector<3x1xf32>
    %179 = arith.cmpf ogt, %171, %178 : vector<3x1xf32>
    %cst_57 = arith.constant 0.000000e+00 : f32
    %180 = vector.shape_cast %179 : vector<3x1xi1> to vector<3x1xi1>
    %181 = vector.broadcast %180 : vector<3x1xi1> to vector<3x32xi1>
    %182 = vector.broadcast %cst_57 : f32 to vector<3x32xf32>
    %183 = arith.select %181, %159, %182 : vector<3x32xi1>, vector<3x32xf32>
    %cst_58 = arith.constant 0.000000e+00 : f32
    %184 = vector.broadcast %cst_58 : f32 to vector<3x61xf32>
    %185 = tpu.concatenate %177, %183, %163, %167, %171, %184 in 1 : vector<3x32xf32>, vector<3x32xf32>, vector<3x1xf32>, vector<3x1xf32>, vector<3x1xf32>, vector<3x61xf32> -> vector<3x128xf32>
    %c0_59 = arith.constant 0 : index
    %c0_60 = arith.constant 0 : index
    %c0_61 = arith.constant 0 : index
    %186 = vector.load %arg16[%c0_59, %c0_60, %c0_61] : memref<1x3x128xf32, #tpu.memory_space<vmem>>, vector<1x3x128xf32>
    %187 = vector.shape_cast %186 : vector<1x3x128xf32> to vector<3x128xf32>
    %188 = vector.shape_cast %185 : vector<3x128xf32> to vector<1x3x128xf32>
    tpu.vector_store %arg16[%c0_59, %c0_60, %c0_61], %188 {strides = array<i32>} : memref<1x3x128xf32, #tpu.memory_space<vmem>>, vector<1x3x128xf32>,
    return
  }
  func.func @transform_0(%arg0: i32) -> (i32, i32, i32) {
    %c0_i32 = arith.constant 0 : i32
    %c0_i32_0 = arith.constant 0 : i32
    %c0_i32_1 = arith.constant 0 : i32
    return %arg0, %c0_i32, %c0_i32_0 : i32, i32, i32
  }
  func.func @transform_1(%arg0: i32) -> (i32, i32, i32) {
    %c0_i32 = arith.constant 0 : i32
    %c0_i32_0 = arith.constant 0 : i32
    %c0_i32_1 = arith.constant 0 : i32
    return %arg0, %c0_i32, %c0_i32_0 : i32, i32, i32
  }
  func.func @transform_2(%arg0: i32) -> (i32, i32, i32) {
    %c0_i32 = arith.constant 0 : i32
    %c0_i32_0 = arith.constant 0 : i32
    %c0_i32_1 = arith.constant 0 : i32
    return %arg0, %c0_i32, %c0_i32_0 : i32, i32, i32
  }
  func.func @transform_3(%arg0: i32) -> (i32, i32) {
    %c0_i32 = arith.constant 0 : i32
    %c0_i32_0 = arith.constant 0 : i32
    %c0_i32_1 = arith.constant 0 : i32
    return %c0_i32, %c0_i32_0 : i32, i32
  }
  func.func @transform_4(%arg0: i32) -> (i32, i32) {
    %c0_i32 = arith.constant 0 : i32
    %c0_i32_0 = arith.constant 0 : i32
    %c0_i32_1 = arith.constant 0 : i32
    return %c0_i32, %c0_i32_0 : i32, i32
  }
  func.func @transform_5(%arg0: i32) -> (i32, i32) {
    %c0_i32 = arith.constant 0 : i32
    %c0_i32_0 = arith.constant 0 : i32
    %c0_i32_1 = arith.constant 0 : i32
    return %c0_i32, %c0_i32_0 : i32, i32
  }
  func.func @transform_6(%arg0: i32) -> (i32, i32) {
    %c0_i32 = arith.constant 0 : i32
    %c0_i32_0 = arith.constant 0 : i32
    %c0_i32_1 = arith.constant 0 : i32
    return %c0_i32, %c0_i32_0 : i32, i32
  }
  func.func @transform_7(%arg0: i32) -> (i32, i32) {
    %c0_i32 = arith.constant 0 : i32
    %c0_i32_0 = arith.constant 0 : i32
    %c0_i32_1 = arith.constant 0 : i32
    return %c0_i32, %c0_i32_0 : i32, i32
  }
  func.func @transform_8(%arg0: i32) -> (i32, i32) {
    %c0_i32 = arith.constant 0 : i32
    %c0_i32_0 = arith.constant 0 : i32
    %c0_i32_1 = arith.constant 0 : i32
    return %c0_i32, %c0_i32_0 : i32, i32
  }
  func.func @transform_9(%arg0: i32) -> (i32, i32) {
    %c0_i32 = arith.constant 0 : i32
    %c0_i32_0 = arith.constant 0 : i32
    %c0_i32_1 = arith.constant 0 : i32
    return %c0_i32, %c0_i32_0 : i32, i32
  }
  func.func @transform_10(%arg0: i32) -> (i32, i32) {
    %c0_i32 = arith.constant 0 : i32
    %c0_i32_0 = arith.constant 0 : i32
    %c0_i32_1 = arith.constant 0 : i32
    return %c0_i32, %c0_i32_0 : i32, i32
  }
  func.func @transform_11(%arg0: i32) -> (i32, i32, i32) {
    %c0_i32 = arith.constant 0 : i32
    %c0_i32_0 = arith.constant 0 : i32
    %c0_i32_1 = arith.constant 0 : i32
    return %arg0, %c0_i32, %c0_i32_0 : i32, i32, i32
  }
  func.func @transform_12(%arg0: i32) -> (i32, i32, i32) {
    %c0_i32 = arith.constant 0 : i32
    %c0_i32_0 = arith.constant 0 : i32
    %c0_i32_1 = arith.constant 0 : i32
    return %arg0, %c0_i32, %c0_i32_0 : i32, i32, i32
  }
  func.func @transform_13(%arg0: i32) -> (i32, i32, i32) {
    %c0_i32 = arith.constant 0 : i32
    %c0_i32_0 = arith.constant 0 : i32
    %c0_i32_1 = arith.constant 0 : i32
    return %arg0, %c0_i32, %c0_i32_0 : i32, i32, i32
  }
  func.func @transform_14(%arg0: i32) -> (i32, i32, i32) {
    %c0_i32 = arith.constant 0 : i32
    %c0_i32_0 = arith.constant 0 : i32
    %c0_i32_1 = arith.constant 0 : i32
    return %arg0, %c0_i32, %c0_i32_0 : i32, i32, i32
  }
  func.func @transform_15(%arg0: i32) -> (i32, i32, i32) {
    %c0_i32 = arith.constant 0 : i32
    %c0_i32_0 = arith.constant 0 : i32
    %c0_i32_1 = arith.constant 0 : i32
    return %arg0, %c0_i32, %c0_i32_0 : i32, i32, i32
  }
}

</mosaic_0001>

<llo_original>
// kernel: run.1
$region0: #{run.1}
  #allocation0 [shape = 'u32[]', space=smem, size = 0x4, offset = 0x4, fixed_abs, tag = 'smem constant byte address 0x4 - core index']
  #allocation1 [shape = 'u32[144,128]{1,0:T(1,128)}', space=vmem, size = 0x12000, scoped, tag = 'internal scratch']
  #allocation2 [shape = 'f32[1,1]{1,0:T(1,128)S(1)}', space=vmem, size = 0x200, scoped, tag = 'scoped memory for run.1']
  %s0 = inlined_call_operand.vmem [shape: f32[2,64,128], index: 0, kind: input, shape index: {}]
  %s1 = inlined_call_operand.vmem [shape: f32[2,3,128], index: 1, kind: input, shape index: {}]
  %s2 = inlined_call_operand.vmem [shape: f32[2,3,12], index: 2, kind: input, shape index: {}]
  %s3 = inlined_call_operand.vmem [shape: f32[32,64], index: 3, kind: input, shape index: {}]
  %s4 = inlined_call_operand.vmem [shape: f32[32,1], index: 4, kind: input, shape index: {}]
  %s5 = inlined_call_operand.vmem [shape: f32[32,1], index: 5, kind: input, shape index: {}]
  %s6 = inlined_call_operand.hbm [shape: f32[32,32], index: 6, kind: input, shape index: {}]
  %s7 = inlined_call_operand.vmem [shape: f32[32,1], index: 7, kind: input, shape index: {}]
  %s8 = inlined_call_operand.vmem [shape: f32[32,1], index: 8, kind: input, shape index: {}]
  %s9 = inlined_call_operand.vmem [shape: f32[1,32], index: 9, kind: input, shape index: {}]
  %s10 = inlined_call_operand.<no memory space> [shape: f32[1,1], index: 10, kind: input, shape index: {}]
  %s11 = inlined_call_operand.hbm [shape: f32[2,1,128], index: 11, kind: output, shape index: {0}]
  %s12 = inlined_call_operand.vmem [shape: f32[2,3,128], index: 12, kind: output, shape index: {1}]
  %s13 = inlined_call_operand.vmem [shape: f32[2,3,128], index: 13, kind: output, shape index: {2}]
  %s14 = inlined_call_operand.vmem [shape: f32[2,3,128], index: 14, kind: output, shape index: {3}]
  %s15 = inlined_call_operand.vmem [shape: f32[2,3,128], index: 15, kind: output, shape index: {4}]
  %16 = xla_tuple %s11, %s12, %s13, %s14, %s15
  %s17 = sld [smem:[#allocation0]]
  $region113: #{run.1} parent=0
    _
  %s19 = ssub.s32 1, %s17
  %s20 = scalar_select 0, %s19, %s17
  %v21 = vstv %s10
  %22 = vst [vmem:[#allocation2] sm:$0x1] %v21
  $region1: #{run.1} parent=0
    #allocation3 [shape = 'u8[16384]{0}', space=vmem, size = 0x4000, scoped, tag = 'input window, operand 6, single buffered']
    #allocation4 [shape = 's32[2]{0}', space=sflag, size = 0x8, scoped, tag = 'scoped memory for run.1']
    #allocation5 [shape = 's32[2]{0}', space=sflag, size = 0x8, scoped, tag = 'scoped memory for run.1']
    #allocation6 [shape = 'u8[1024]{0}', space=vmem, size = 0x400, scoped, tag = 'output window, operand 0']
    %23 = vsyncpa [#allocation4], 0
    %24 = vsyncpa [#allocation5], 0
    %s25 = scalar_lea.sflag [#allocation5], 1
    %26 = vsyncpa %s25, 0
    loop: start=0, step=1, limit=4
    $region2: #{run.1} parent=1 // loop_pre_header
      _
    $region3: #{run.1} parent=1 // loop_header
      %s28 = sphi 0, %s32
      %p29 = scmp.ge.s32.totalorder %s28, 4
      %s38 = sphi 0, %s40
      %s41 = sphi 0, %s38
      %s42 = sphi 0, %s41
      %s58 = sphi 0, %s42
      %s64 = sphi 0, %s66
      %s67 = sphi 0, %s64
      %s68 = sphi 0, %s67
      %s84 = sphi 0, %s68
      %s90 = sphi 0, %s92
      %s93 = sphi 0, %s90
      %s94 = sphi 0, %s93
      %s110 = sphi 0, %s94
      %s114 = sphi 0, %s114
      %s116 = sphi 0, %s114
      %s117 = sphi 0, %s116
      %s131 = sphi 0, %s117
      %s135 = sphi 0, %s135
      %s137 = sphi 0, %s135
      %s138 = sphi 0, %s137
      %s152 = sphi 0, %s138
      %s156 = sphi 0, %s156
      %s158 = sphi 0, %s156
      %s159 = sphi 0, %s158
      %s173 = sphi 0, %s159
      %s177 = sphi 0, %s177
      %s179 = sphi 0, %s177
      %s180 = sphi 0, %s179
      %s194 = sphi 0, %s180
      %s198 = sphi 0, %s198
      %s200 = sphi 0, %s198
      %s201 = sphi 0, %s200
      %s215 = sphi 0, %s201
      %s219 = sphi 0, %s219
      %s221 = sphi 0, %s219
      %s222 = sphi 0, %s221
      %s236 = sphi 0, %s222
      %s240 = sphi 0, %s240
      %s242 = sphi 0, %s240
      %s243 = sphi 0, %s242
      %s257 = sphi 0, %s243
      %s261 = sphi 0, %s261
      %s263 = sphi 0, %s261
      %s264 = sphi 0, %s263
      %s278 = sphi 0, %s264
      %s284 = sphi 0, %s286
      %s287 = sphi 0, %s284
      %s288 = sphi 0, %s287
      %s304 = sphi 0, %s288
      %s310 = sphi 0, %s312
      %s313 = sphi 0, %s310
      %s314 = sphi 0, %s313
      %s330 = sphi 0, %s314
      %s336 = sphi 0, %s338
      %s339 = sphi 0, %s336
      %s340 = sphi 0, %s339
      %s356 = sphi 0, %s340
      %s362 = sphi 0, %s364
      %s365 = sphi 0, %s362
      %s366 = sphi 0, %s365
      %s382 = sphi 0, %s366
      %s388 = sphi 0, %s390
      %s391 = sphi 0, %s388
      %s392 = sphi 0, %s391
      %s408 = sphi 0, %s392
    $region4: #{run.1} parent=1 // loop_header_branch
      %31 = sbr.rel (%p29) target = $region8
    $region5: #{run.1} parent=1 // loop_body
      %s33 = ssub.s32 %s28, 1
      %s34 = ssub.s32 %s28, 2
      %s35 = sadd.s32 %s28, 1
      %s36 = ssub.s32 %s28, %s35
      %p37 = scmp.eq.s32.totalorder %s36, 0
      %s39 = sadd.s32 %s38, 1
      %s40 = scalar_select %p37, %s38, %s39
      %p43 = pneg %p37
      %p44 = scmp.eq.s32.totalorder %s28, 1
      %p45 = por %p43, %p44
      %p46 = scmp.ne.s32.totalorder %s38, %s41
      %p47 = scmp.eq.s32.totalorder %s28, 0
      %p48 = por %p46, %p47
      %p49 = scmp.ne.s32.totalorder %s38, %s41
      %p50 = scmp.eq.s32.totalorder %s33, 1
      %p51 = por %p49, %p50
      %p52 = scmp.ne.s32.totalorder %s41, %s42
      %p53 = scmp.eq.s32.totalorder %s33, 0
      %p54 = por %p52, %p53
      %p55 = scmp.ne.s32.totalorder %s41, %s42
      %p56 = scmp.eq.s32.totalorder %s34, 1
      %p57 = por %p55, %p56
      %p59 = scmp.ne.s32.totalorder %s42, %s58
      %p60 = scmp.eq.s32.totalorder %s34, 0
      %p61 = por %p59, %p60
      %s62 = ssub.s32 %s28, %s35
      %p63 = scmp.eq.s32.totalorder %s62, 0
      %s65 = sadd.s32 %s64, 1
      %s66 = scalar_select %p63, %s64, %s65
      %p69 = pneg %p63
      %p70 = scmp.eq.s32.totalorder %s28, 1
      %p71 = por %p69, %p70
      %p72 = scmp.ne.s32.totalorder %s64, %s67
      %p73 = scmp.eq.s32.totalorder %s28, 0
      %p74 = por %p72, %p73
      %p75 = scmp.ne.s32.totalorder %s64, %s67
      %p76 = scmp.eq.s32.totalorder %s33, 1
      %p77 = por %p75, %p76
      %p78 = scmp.ne.s32.totalorder %s67, %s68
      %p79 = scmp.eq.s32.totalorder %s33, 0
      %p80 = por %p78, %p79
      %p81 = scmp.ne.s32.totalorder %s67, %s68
      %p82 = scmp.eq.s32.totalorder %s34, 1
      %p83 = por %p81, %p82
      %p85 = scmp.ne.s32.totalorder %s68, %s84
      %p86 = scmp.eq.s32.totalorder %s34, 0
      %p87 = por %p85, %p86
      %s88 = ssub.s32 %s28, %s35
      %p89 = scmp.eq.s32.totalorder %s88, 0
      %s91 = sadd.s32 %s90, 1
      %s92 = scalar_select %p89, %s90, %s91
      %p95 = pneg %p89
      %p96 = scmp.eq.s32.totalorder %s28, 1
      %p97 = por %p95, %p96
      %p98 = scmp.ne.s32.totalorder %s90, %s93
      %p99 = scmp.eq.s32.totalorder %s28, 0
      %p100 = por %p98, %p99
      %p101 = scmp.ne.s32.totalorder %s90, %s93
      %p102 = scmp.eq.s32.totalorder %s33, 1
      %p103 = por %p101, %p102
      %p104 = scmp.ne.s32.totalorder %s93, %s94
      %p105 = scmp.eq.s32.totalorder %s33, 0
      %p106 = por %p104, %p105
      %p107 = scmp.ne.s32.totalorder %s93, %s94
      %p108 = scmp.eq.s32.totalorder %s34, 1
      %p109 = por %p107, %p108
      %p111 = scmp.ne.s32.totalorder %s94, %s110
      %p112 = scmp.eq.s32.totalorder %s34, 0
      %p113 = por %p111, %p112
      %s115 = sadd.s32 %s114, 1
      %p118 = scmp.eq.s32.totalorder %s28, 1
      %p119 = scmp.ne.s32.totalorder %s114, %s116
      %p120 = scmp.eq.s32.totalorder %s28, 0
      %p121 = por %p119, %p120
      %p122 = scmp.ne.s32.totalorder %s114, %s116
      %p123 = scmp.eq.s32.totalorder %s33, 1
      %p124 = por %p122, %p123
      %p125 = scmp.ne.s32.totalorder %s116, %s117
      %p126 = scmp.eq.s32.totalorder %s33, 0
      %p127 = por %p125, %p126
      %p128 = scmp.ne.s32.totalorder %s116, %s117
      %p129 = scmp.eq.s32.totalorder %s34, 1
      %p130 = por %p128, %p129
      %p132 = scmp.ne.s32.totalorder %s117, %s131
      %p133 = scmp.eq.s32.totalorder %s34, 0
      %p134 = por %p132, %p133
      %s136 = sadd.s32 %s135, 1
      %p139 = scmp.eq.s32.totalorder %s28, 1
      %p140 = scmp.ne.s32.totalorder %s135, %s137
      %p141 = scmp.eq.s32.totalorder %s28, 0
      %p142 = por %p140, %p141
      %p143 = scmp.ne.s32.totalorder %s135, %s137
      %p144 = scmp.eq.s32.totalorder %s33, 1
      %p145 = por %p143, %p144
      %p146 = scmp.ne.s32.totalorder %s137, %s138
      %p147 = scmp.eq.s32.totalorder %s33, 0
      %p148 = por %p146, %p147
      %p149 = scmp.ne.s32.totalorder %s137, %s138
      %p150 = scmp.eq.s32.totalorder %s34, 1
      %p151 = por %p149, %p150
      %p153 = scmp.ne.s32.totalorder %s138, %s152
      %p154 = scmp.eq.s32.totalorder %s34, 0
      %p155 = por %p153, %p154
      %s157 = sadd.s32 %s156, 1
      %p160 = scmp.eq.s32.totalorder %s28, 1
      %p161 = scmp.ne.s32.totalorder %s156, %s158
      %p162 = scmp.eq.s32.totalorder %s28, 0
      %p163 = por %p161, %p162
      %p164 = scmp.ne.s32.totalorder %s156, %s158
      %p165 = scmp.eq.s32.totalorder %s33, 1
      %p166 = por %p164, %p165
      %p167 = scmp.ne.s32.totalorder %s158, %s159
      %p168 = scmp.eq.s32.totalorder %s33, 0
      %p169 = por %p167, %p168
      %p170 = scmp.ne.s32.totalorder %s158, %s159
      %p171 = scmp.eq.s32.totalorder %s34, 1
      %p172 = por %p170, %p171
      %p174 = scmp.ne.s32.totalorder %s159, %s173
      %p175 = scmp.eq.s32.totalorder %s34, 0
      %p176 = por %p174, %p175
      %s178 = sadd.s32 %s177, 1
      %p181 = scmp.eq.s32.totalorder %s28, 1
      %p182 = scmp.ne.s32.totalorder %s177, %s179
      %p183 = scmp.eq.s32.totalorder %s28, 0
      %p184 = por %p182, %p183
      %p185 = scmp.ne.s32.totalorder %s177, %s179
      %p186 = scmp.eq.s32.totalorder %s33, 1
      %p187 = por %p185, %p186
      %p188 = scmp.ne.s32.totalorder %s179, %s180
      %p189 = scmp.eq.s32.totalorder %s33, 0
      %p190 = por %p188, %p189
      %p191 = scmp.ne.s32.totalorder %s179, %s180
      %p192 = scmp.eq.s32.totalorder %s34, 1
      %p193 = por %p191, %p192
      %p195 = scmp.ne.s32.totalorder %s180, %s194
      %p196 = scmp.eq.s32.totalorder %s34, 0
      %p197 = por %p195, %p196
      %s199 = sadd.s32 %s198, 1
      %p202 = scmp.eq.s32.totalorder %s28, 1
      %p203 = scmp.ne.s32.totalorder %s198, %s200
      %p204 = scmp.eq.s32.totalorder %s28, 0
      %p205 = por %p203, %p204
      %p206 = scmp.ne.s32.totalorder %s198, %s200
      %p207 = scmp.eq.s32.totalorder %s33, 1
      %p208 = por %p206, %p207
      %p209 = scmp.ne.s32.totalorder %s200, %s201
      %p210 = scmp.eq.s32.totalorder %s33, 0
      %p211 = por %p209, %p210
      %p212 = scmp.ne.s32.totalorder %s200, %s201
      %p213 = scmp.eq.s32.totalorder %s34, 1
      %p214 = por %p212, %p213
      %p216 = scmp.ne.s32.totalorder %s201, %s215
      %p217 = scmp.eq.s32.totalorder %s34, 0
      %p218 = por %p216, %p217
      %s220 = sadd.s32 %s219, 1
      %p223 = scmp.eq.s32.totalorder %s28, 1
      %p224 = scmp.ne.s32.totalorder %s219, %s221
      %p225 = scmp.eq.s32.totalorder %s28, 0
      %p226 = por %p224, %p225
      %p227 = scmp.ne.s32.totalorder %s219, %s221
      %p228 = scmp.eq.s32.totalorder %s33, 1
      %p229 = por %p227, %p228
      %p230 = scmp.ne.s32.totalorder %s221, %s222
      %p231 = scmp.eq.s32.totalorder %s33, 0
      %p232 = por %p230, %p231
      %p233 = scmp.ne.s32.totalorder %s221, %s222
      %p234 = scmp.eq.s32.totalorder %s34, 1
      %p235 = por %p233, %p234
      %p237 = scmp.ne.s32.totalorder %s222, %s236
      %p238 = scmp.eq.s32.totalorder %s34, 0
      %p239 = por %p237, %p238
      %s241 = sadd.s32 %s240, 1
      %p244 = scmp.eq.s32.totalorder %s28, 1
      %p245 = scmp.ne.s32.totalorder %s240, %s242
      %p246 = scmp.eq.s32.totalorder %s28, 0
      %p247 = por %p245, %p246
      %p248 = scmp.ne.s32.totalorder %s240, %s242
      %p249 = scmp.eq.s32.totalorder %s33, 1
      %p250 = por %p248, %p249
      %p251 = scmp.ne.s32.totalorder %s242, %s243
      %p252 = scmp.eq.s32.totalorder %s33, 0
      %p253 = por %p251, %p252
      %p254 = scmp.ne.s32.totalorder %s242, %s243
      %p255 = scmp.eq.s32.totalorder %s34, 1
      %p256 = por %p254, %p255
      %p258 = scmp.ne.s32.totalorder %s243, %s257
      %p259 = scmp.eq.s32.totalorder %s34, 0
      %p260 = por %p258, %p259
      %s262 = sadd.s32 %s261, 1
      %p265 = scmp.eq.s32.totalorder %s28, 1
      %p266 = scmp.ne.s32.totalorder %s261, %s263
      %p267 = scmp.eq.s32.totalorder %s28, 0
      %p268 = por %p266, %p267
      %p269 = scmp.ne.s32.totalorder %s261, %s263
      %p270 = scmp.eq.s32.totalorder %s33, 1
      %p271 = por %p269, %p270
      %p272 = scmp.ne.s32.totalorder %s263, %s264
      %p273 = scmp.eq.s32.totalorder %s33, 0
      %p274 = por %p272, %p273
      %p275 = scmp.ne.s32.totalorder %s263, %s264
      %p276 = scmp.eq.s32.totalorder %s34, 1
      %p277 = por %p275, %p276
      %p279 = scmp.ne.s32.totalorder %s264, %s278
      %p280 = scmp.eq.s32.totalorder %s34, 0
      %p281 = por %p279, %p280
      %s282 = ssub.s32 %s28, %s35
      %p283 = scmp.eq.s32.totalorder %s282, 0
      %s285 = sadd.s32 %s284, 1
      %s286 = scalar_select %p283, %s284, %s285
      %p289 = pneg %p283
      %p290 = scmp.eq.s32.totalorder %s28, 1
      %p291 = por %p289, %p290
      %p292 = scmp.ne.s32.totalorder %s284, %s287
      %p293 = scmp.eq.s32.totalorder %s28, 0
      %p294 = por %p292, %p293
      %p295 = scmp.ne.s32.totalorder %s284, %s287
      %p296 = scmp.eq.s32.totalorder %s33, 1
      %p297 = por %p295, %p296
      %p298 = scmp.ne.s32.totalorder %s287, %s288
      %p299 = scmp.eq.s32.totalorder %s33, 0
      %p300 = por %p298, %p299
      %p301 = scmp.ne.s32.totalorder %s287, %s288
      %p302 = scmp.eq.s32.totalorder %s34, 1
      %p303 = por %p301, %p302
      %p305 = scmp.ne.s32.totalorder %s288, %s304
      %p306 = scmp.eq.s32.totalorder %s34, 0
      %p307 = por %p305, %p306
      %s308 = ssub.s32 %s28, %s35
      %p309 = scmp.eq.s32.totalorder %s308, 0
      %s311 = sadd.s32 %s310, 1
      %s312 = scalar_select %p309, %s310, %s311
      %p315 = pneg %p309
      %p316 = scmp.eq.s32.totalorder %s28, 1
      %p317 = por %p315, %p316
      %p318 = scmp.ne.s32.totalorder %s310, %s313
      %p319 = scmp.eq.s32.totalorder %s28, 0
      %p320 = por %p318, %p319
      %p321 = scmp.ne.s32.totalorder %s310, %s313
      %p322 = scmp.eq.s32.totalorder %s33, 1
      %p323 = por %p321, %p322
      %p324 = scmp.ne.s32.totalorder %s313, %s314
      %p325 = scmp.eq.s32.totalorder %s33, 0
      %p326 = por %p324, %p325
      %p327 = scmp.ne.s32.totalorder %s313, %s314
      %p328 = scmp.eq.s32.totalorder %s34, 1
      %p329 = por %p327, %p328
      %p331 = scmp.ne.s32.totalorder %s314, %s330
      %p332 = scmp.eq.s32.totalorder %s34, 0
      %p333 = por %p331, %p332
      %s334 = ssub.s32 %s28, %s35
      %p335 = scmp.eq.s32.totalorder %s334, 0
      %s337 = sadd.s32 %s336, 1
      %s338 = scalar_select %p335, %s336, %s337
      %p341 = pneg %p335
      %p342 = scmp.eq.s32.totalorder %s28, 1
      %p343 = por %p341, %p342
      %p344 = scmp.ne.s32.totalorder %s336, %s339
      %p345 = scmp.eq.s32.totalorder %s28, 0
      %p346 = por %p344, %p345
      %p347 = scmp.ne.s32.totalorder %s336, %s339
      %p348 = scmp.eq.s32.totalorder %s33, 1
      %p349 = por %p347, %p348
      %p350 = scmp.ne.s32.totalorder %s339, %s340
      %p351 = scmp.eq.s32.totalorder %s33, 0
      %p352 = por %p350, %p351
      %p353 = scmp.ne.s32.totalorder %s339, %s340
      %p354 = scmp.eq.s32.totalorder %s34, 1
      %p355 = por %p353, %p354
      %p357 = scmp.ne.s32.totalorder %s340, %s356
      %p358 = scmp.eq.s32.totalorder %s34, 0
      %p359 = por %p357, %p358
      %s360 = ssub.s32 %s28, %s35
      %p361 = scmp.eq.s32.totalorder %s360, 0
      %s363 = sadd.s32 %s362, 1
      %s364 = scalar_select %p361, %s362, %s363
      %p367 = pneg %p361
      %p368 = scmp.eq.s32.totalorder %s28, 1
      %p369 = por %p367, %p368
      %p370 = scmp.ne.s32.totalorder %s362, %s365
      %p371 = scmp.eq.s32.totalorder %s28, 0
      %p372 = por %p370, %p371
      %p373 = scmp.ne.s32.totalorder %s362, %s365
      %p374 = scmp.eq.s32.totalorder %s33, 1
      %p375 = por %p373, %p374
      %p376 = scmp.ne.s32.totalorder %s365, %s366
      %p377 = scmp.eq.s32.totalorder %s33, 0
      %p378 = por %p376, %p377
      %p379 = scmp.ne.s32.totalorder %s365, %s366
      %p380 = scmp.eq.s32.totalorder %s34, 1
      %p381 = por %p379, %p380
      %p383 = scmp.ne.s32.totalorder %s366, %s382
      %p384 = scmp.eq.s32.totalorder %s34, 0
      %p385 = por %p383, %p384
      %s386 = ssub.s32 %s28, %s35
      %p387 = scmp.eq.s32.totalorder %s386, 0
      %s389 = sadd.s32 %s388, 1
      %s390 = scalar_select %p387, %s388, %s389
      %p393 = pneg %p387
      %p394 = scmp.eq.s32.totalorder %s28, 1
      %p395 = por %p393, %p394
      %p396 = scmp.ne.s32.totalorder %s388, %s391
      %p397 = scmp.eq.s32.totalorder %s28, 0
      %p398 = por %p396, %p397
      %p399 = scmp.ne.s32.totalorder %s388, %s391
      %p400 = scmp.eq.s32.totalorder %s33, 1
      %p401 = por %p399, %p400
      %p402 = scmp.ne.s32.totalorder %s391, %s392
      %p403 = scmp.eq.s32.totalorder %s33, 0
      %p404 = por %p402, %p403
      %p405 = scmp.ne.s32.totalorder %s391, %s392
      %p406 = scmp.eq.s32.totalorder %s34, 1
      %p407 = por %p405, %p406
      %p409 = scmp.ne.s32.totalorder %s392, %s408
      %p410 = scmp.eq.s32.totalorder %s34, 0
      %p411 = por %p409, %p410
      %p412 = scmp.le.s32.totalorder 1, %s28
      %p413 = scmp.lt.s32.totalorder %s28, 3
      %p414 = pnand %p412, %p413
      %p415 = pneg %p414
      // Predicated region
      $region9: #{run.1} parent=5 // pred_check
        _
      $region10: #{run.1} parent=5 // pred_check_branch
        %417 = sbr.rel (%p414) target = $region12
      $region11: #{run.1} parent=5 // pred_region
        %s418 = ssub.s32 %s28, 1
        // Predicated region
        $region13: #{run.1} parent=11 // pred_check
          %p419 = pneg %p127
        $region14: #{run.1} parent=11 // pred_check_branch
          %421 = sbr.rel (%p419) target = $region16
        $region15: #{run.1} parent=11 // pred_region
          _
        $region16: #{run.1} parent=11 // pred_fallthru
          _
        // Predicated region
        $region17: #{run.1} parent=11 // pred_check
          %p422 = pneg %p148
        $region18: #{run.1} parent=11 // pred_check_branch
          %424 = sbr.rel (%p422) target = $region20
        $region19: #{run.1} parent=11 // pred_region
          _
        $region20: #{run.1} parent=11 // pred_fallthru
          _
        // Predicated region
        $region21: #{run.1} parent=11 // pred_check
          %p425 = pneg %p169
        $region22: #{run.1} parent=11 // pred_check_branch
          %427 = sbr.rel (%p425) target = $region24
        $region23: #{run.1} parent=11 // pred_region
          _
        $region24: #{run.1} parent=11 // pred_fallthru
          _
        // Predicated region
        $region25: #{run.1} parent=11 // pred_check
          %p428 = pneg %p190
        $region26: #{run.1} parent=11 // pred_check_branch
          %430 = sbr.rel (%p428) target = $region28
        $region27: #{run.1} parent=11 // pred_region
          %s432 = ssub.s32 512, 512
          %433 = vsyncadd [#allocation4], %s432
          %s434 = sshll.u32 [#allocation3], 4
          %s435 = int_to_ptr.vmem [resolvable:$true] %s434
          %440 = dma.hbm_to_vmem [thread:$0]  %s6, 512, %s435, [#allocation4], 128, 128, 8
        $region28: #{run.1} parent=11 // pred_fallthru
          _
        // Predicated region
        $region29: #{run.1} parent=11 // pred_check
          %p441 = pneg %p211
        $region30: #{run.1} parent=11 // pred_check_branch
          %443 = sbr.rel (%p441) target = $region32
        $region31: #{run.1} parent=11 // pred_region
          _
        $region32: #{run.1} parent=11 // pred_fallthru
          _
        // Predicated region
        $region33: #{run.1} parent=11 // pred_check
          %p444 = pneg %p232
        $region34: #{run.1} parent=11 // pred_check_branch
          %446 = sbr.rel (%p444) target = $region36
        $region35: #{run.1} parent=11 // pred_region
          _
        $region36: #{run.1} parent=11 // pred_fallthru
          _
        // Predicated region
        $region37: #{run.1} parent=11 // pred_check
          %p447 = pneg %p253
        $region38: #{run.1} parent=11 // pred_check_branch
          %449 = sbr.rel (%p447) target = $region40
        $region39: #{run.1} parent=11 // pred_region
          _
        $region40: #{run.1} parent=11 // pred_fallthru
          _
        // Predicated region
        $region41: #{run.1} parent=11 // pred_check
          %p450 = pneg %p274
        $region42: #{run.1} parent=11 // pred_check_branch
          %452 = sbr.rel (%p450) target = $region44
        $region43: #{run.1} parent=11 // pred_region
          _
        $region44: #{run.1} parent=11 // pred_fallthru
          _
      $region12: #{run.1} parent=5 // pred_fallthru
        _
      %p453 = scmp.lt.s32.totalorder %s28, 2
      // Predicated region
      $region45: #{run.1} parent=5 // pred_check
        %p454 = pneg %p453
      $region46: #{run.1} parent=5 // pred_check_branch
        %456 = sbr.rel (%p454) target = $region48
      $region47: #{run.1} parent=5 // pred_region
        // Predicated region
        $region49: #{run.1} parent=47 // pred_check
          %p457 = pneg %p48
        $region50: #{run.1} parent=47 // pred_check_branch
          %459 = sbr.rel (%p457) target = $region52
        $region51: #{run.1} parent=47 // pred_region
          %p460 = scmp.lt.s32.totalorder %s28, 1
          %s461 = scalar_select %p460, %s28, 1
          %s462 = smul.addr %s461, 8
          %s463 = smul.addr %s462, 8
          %s464 = scalar_lea.vmem %s0, %s463
        $region52: #{run.1} parent=47 // pred_fallthru
          _
        // Predicated region
        $region53: #{run.1} parent=47 // pred_check
          %p465 = pneg %p74
        $region54: #{run.1} parent=47 // pred_check_branch
          %467 = sbr.rel (%p465) target = $region56
        $region55: #{run.1} parent=47 // pred_region
          %p468 = scmp.lt.s32.totalorder %s28, 1
          %s469 = scalar_select %p468, %s28, 1
          %s470 = smul.addr %s469, 4
          %s471 = scalar_lea.vmem %s1, %s470
        $region56: #{run.1} parent=47 // pred_fallthru
          _
        // Predicated region
        $region57: #{run.1} parent=47 // pred_check
          %p472 = pneg %p100
        $region58: #{run.1} parent=47 // pred_check_branch
          %474 = sbr.rel (%p472) target = $region60
        $region59: #{run.1} parent=47 // pred_region
          %p475 = scmp.lt.s32.totalorder %s28, 1
          %s476 = scalar_select %p475, %s28, 1
          %s477 = smul.addr %s476, 4
          %s478 = scalar_lea.vmem %s2, %s477
        $region60: #{run.1} parent=47 // pred_fallthru
          _
      $region48: #{run.1} parent=5 // pred_fallthru
        _
      %p479 = scmp.le.s32.totalorder 1, %s28
      %p480 = scmp.lt.s32.totalorder %s28, 3
      %p481 = pnand %p479, %p480
      %p482 = pneg %p481
      // Predicated region
      $region61: #{run.1} parent=5 // pred_check
        _
      $region62: #{run.1} parent=5 // pred_check_branch
        %484 = sbr.rel (%p481) target = $region64
      $region63: #{run.1} parent=5 // pred_region
        %s485 = ssub.s32 %s28, 1
        // Predicated region
        $region65: #{run.1} parent=63 // pred_check
          %p486 = pneg %p190
        $region66: #{run.1} parent=63 // pred_check_branch
          %488 = sbr.rel (%p486) target = $region68
        $region67: #{run.1} parent=63 // pred_region
          %489 = dma.done [#allocation4], 512
        $region68: #{run.1} parent=63 // pred_fallthru
          _
        %p490 = scmp.lt.s32.totalorder %s33, 1
        %s491 = scalar_select %p490, %s33, 1
        %s492 = smul.addr %s491, 8
        %s493 = smul.addr %s492, 8
        %s494 = scalar_lea.vmem %s0, %s493
        %p495 = pneg %p54
        %p496 = pneg %p51
        %p497 = scmp.lt.s32.totalorder %s33, 1
        %s498 = scalar_select %p497, %s33, 1
        %s499 = smul.addr %s498, 4
        %s500 = scalar_lea.vmem %s1, %s499
        %p501 = pneg %p80
        %p502 = pneg %p77
        %p503 = scmp.lt.s32.totalorder %s33, 1
        %s504 = scalar_select %p503, %s33, 1
        %s505 = smul.addr %s504, 4
        %s506 = scalar_lea.vmem %s2, %s505
        %p507 = pneg %p106
        %p508 = pneg %p103
        %p509 = pneg %p127
        %p510 = pneg %p124
        %p511 = pneg %p148
        %p512 = pneg %p145
        %p513 = pneg %p169
        %p514 = pneg %p166
        %p515 = pneg %p190
        %p516 = pneg %p187
        %p517 = pneg %p211
        %p518 = pneg %p208
        %p519 = pneg %p232
        %p520 = pneg %p229
        %p521 = pneg %p253
        %p522 = pneg %p250
        %p523 = pneg %p274
        %p524 = pneg %p271
        %p525 = pneg %p300
        %p526 = pneg %p297
        %s527 = sand.u32 %s287, 1
        %s528 = scalar_lea.sflag [#allocation5], %s527
        %s529 = sand.u32 %s287, 1
        %s530 = scalar_lea.vmem [#allocation6], %s529
        %p531 = pneg %p326
        %p532 = pneg %p323
        %p533 = scmp.lt.s32.totalorder %s33, 1
        %s534 = scalar_select %p533, %s33, 1
        %s535 = smul.addr %s534, 4
        %s536 = scalar_lea.vmem %s12, %s535
        %p537 = pneg %p352
        %p538 = pneg %p349
        %p539 = scmp.lt.s32.totalorder %s33, 1
        %s540 = scalar_select %p539, %s33, 1
        %s541 = smul.addr %s540, 4
        %s542 = scalar_lea.vmem %s13, %s541
        %p543 = pneg %p378
        %p544 = pneg %p375
        %p545 = scmp.lt.s32.totalorder %s33, 1
        %s546 = scalar_select %p545, %s33, 1
        %s547 = smul.addr %s546, 4
        %s548 = scalar_lea.vmem %s14, %s547
        %p549 = pneg %p404
        %p550 = pneg %p401
        %p551 = scmp.lt.s32.totalorder %s33, 1
        %s552 = scalar_select %p551, %s33, 1
        %s553 = smul.addr %s552, 4
        %s554 = scalar_lea.vmem %s15, %s553
        %p555 = scmp.lt.s32.totalorder %s33, 1
        %s556 = scalar_select %p555, %s33, 1
        %s557 = smul.addr %s556, 8
        %s558 = smul.addr %s557, 8
        %s559 = scalar_lea.vmem %s0, %s558
        %p560 = scmp.lt.s32.totalorder %s33, 1
        %s561 = scalar_select %p560, %s33, 1
        %s562 = smul.addr %s561, 4
        %s563 = scalar_lea.vmem %s1, %s562
        %p564 = scmp.lt.s32.totalorder %s33, 1
        %s565 = scalar_select %p564, %s33, 1
        %s566 = smul.addr %s565, 4
        %s567 = scalar_lea.vmem %s2, %s566
        %p568 = scmp.lt.s32.totalorder %s33, 1
        %s569 = scalar_select %p568, %s33, 1
        %s570 = smul.addr %s569, 4
        %s571 = scalar_lea.vmem %s12, %s570
        %p572 = scmp.lt.s32.totalorder %s33, 1
        %s573 = scalar_select %p572, %s33, 1
        %s574 = smul.addr %s573, 4
        %s575 = scalar_lea.vmem %s13, %s574
        %p576 = scmp.lt.s32.totalorder %s33, 1
        %s577 = scalar_select %p576, %s33, 1
        %s578 = smul.addr %s577, 4
        %s579 = scalar_lea.vmem %s14, %s578
        %p580 = scmp.lt.s32.totalorder %s33, 1
        %s581 = scalar_select %p580, %s33, 1
        %s582 = smul.addr %s581, 4
        %s583 = scalar_lea.vmem %s15, %s582
        %v584 = vld [vmem:[%s559] sm:$0xff]
        %v585 = vld [vmem:[%s559 + $0x8] sm:$0xff]
        %v586 = vld [vmem:[%s559 + $0x10] sm:$0xff]
        %v587 = vld [vmem:[%s559 + $0x18] sm:$0xff]
        %v588 = vld [vmem:[%s559 + $0x20] sm:$0xff]
        %v589 = vld [vmem:[%s559 + $0x28] sm:$0xff]
        %v590 = vld [vmem:[%s559 + $0x30] sm:$0xff]
        %v591 = vld [vmem:[%s559 + $0x38] sm:$0xff]
        %v592 = vld [vmem:[%s563] sm:$0x7]
        %v593 = vld [vmem:[%s567] sm:$0x7]
        %v594 = vld [vmem:[%s3] sm:$0xff]
        %v595 = vld [vmem:[%s3 + $0x8] sm:$0xff]
        %v596 = vld [vmem:[%s3 + $0x10] sm:$0xff]
        %v597 = vld [vmem:[%s3 + $0x18] sm:$0xff]
        %vm598 = vcmask 523264
        %v600 = vsel %vm598, %v594, 0
        %v603 = vsel %vm598, %v595, 0
        %v606 = vsel %vm598, %v596, 0
        %v609 = vsel %vm598, %v597, 0
        %611 = vmatprep.subr.mxu0 0.0
        %612 = vmatpush1.msra.mxu0 0.0
        %613 = vmatprep.subr.mxu0 0.0
        %614 = vmatpush1.msra.mxu0 0.0
        %615 = vmatprep.subr.mxu0 0.0
        %616 = vmatpush1.msra.mxu0 0.0
        %617 = vmatprep.subr.mxu0 0.0
        %618 = vmatpush1.msra.mxu0 0.0
        %619 = vmatprep.subr.mxu0 0.0
        %620 = vmatpush1.msra.mxu0 0.0
        %621 = vmatprep.subr.mxu0 0.0
        %622 = vmatpush1.msra.mxu0 0.0
        %623 = vmatprep.subr.mxu0 0.0
        %624 = vmatpush1.msra.mxu0 0.0
        %625 = vmatprep.subr.mxu0 0.0
        %626 = vmatpush1.msra.mxu0 0.0
        %627 = vmatprep.subr.mxu0 0.0
        %628 = vmatpush1.msra.mxu0 %v591
        %629 = vmatprep.subr.mxu0 0.0
        %630 = vmatpush1.msra.mxu0 %v590
        %631 = vmatprep.subr.mxu0 0.0
        %632 = vmatpush1.msra.mxu0 %v589
        %633 = vmatprep.subr.mxu0 0.0
        %634 = vmatpush1.msra.mxu0 %v588
        %635 = vmatprep.subr.mxu0 0.0
        %636 = vmatpush1.msra.mxu0 %v587
        %637 = vmatprep.subr.mxu0 0.0
        %638 = vmatpush1.msra.mxu0 %v586
        %639 = vmatprep.subr.mxu0 0.0
        %640 = vmatpush1.msra.mxu0 %v585
        %641 = vmatprep.subr.mxu0 0.0
        %642 = vmatpush1.msra.mxu0 %v584
        %643 = vmatprep.subr.mxu0 0.0
        %644 = vmatpush2.msra.mxu0 0.0
        %645 = vmatprep.subr.mxu0 0.0
        %646 = vmatpush2.msra.mxu0 0.0
        %647 = vmatprep.subr.mxu0 0.0
        %648 = vmatpush2.msra.mxu0 0.0
        %649 = vmatprep.subr.mxu0 0.0
        %650 = vmatpush2.msra.mxu0 0.0
        %651 = vmatprep.subr.mxu0 0.0
        %652 = vmatpush2.msra.mxu0 0.0
        %653 = vmatprep.subr.mxu0 0.0
        %654 = vmatpush2.msra.mxu0 0.0
        %655 = vmatprep.subr.mxu0 0.0
        %656 = vmatpush2.msra.mxu0 0.0
        %657 = vmatprep.subr.mxu0 0.0
        %658 = vmatpush2.msra.mxu0 0.0
        %659 = vmatprep.subr.mxu0 0.0
        %660 = vmatpush2.msra.mxu0 0.0
        %661 = vmatprep.subr.mxu0 0.0
        %662 = vmatpush2.msra.mxu0 0.0
        %663 = vmatprep.subr.mxu0 0.0
        %664 = vmatpush2.msra.mxu0 0.0
        %665 = vmatprep.subr.mxu0 0.0
        %666 = vmatpush2.msra.mxu0 0.0
        %667 = vmatprep.subr.mxu0 0.0
        %668 = vmatpush2.msra.mxu0 0.0
        %669 = vmatprep.subr.mxu0 0.0
        %670 = vmatpush2.msra.mxu0 0.0
        %671 = vmatprep.subr.mxu0 0.0
        %672 = vmatpush2.msra.mxu0 0.0
        %673 = vmatprep.subr.mxu0 0.0
        %674 = vmatpush2.msra.mxu0 0.0
        %675 = vmatprep.mubr.f32.mxu0 0.0
        %676 = vmatmul.mubr.f32.gmra.mxu0 %v600
        %v677 = vpop.f32.mrf.mxu0
        %v678 = vadd.f32 0.0, %v677
        %v679 = vpop.f32.mrf.mxu0
        %680 = vmatprep.mubr.f32.mxu0 0.0
        %681 = vmatmul.mubr.f32.gmra.mxu0 %v603
        %v682 = vpop.f32.mrf.mxu0
        %v683 = vadd.f32 0.0, %v682
        %v684 = vpop.f32.mrf.mxu0
        %685 = vmatprep.mubr.f32.mxu0 0.0
        %686 = vmatmul.mubr.f32.gmra.mxu0 %v606
        %v687 = vpop.f32.mrf.mxu0
        %v688 = vadd.f32 0.0, %v687
        %v689 = vpop.f32.mrf.mxu0
        %690 = vmatprep.mubr.f32.mxu0 0.0
        %691 = vmatmul.mubr.f32.gmra.mxu0 %v609
        %v692 = vpop.f32.mrf.mxu0
        %v693 = vadd.f32 0.0, %v692
        %v694 = vpop.f32.mrf.mxu0
        %695 = vdwg.mxu0
        %v696 = vld [vmem:[%s4] sm:$0xff]
        %v697 = vld [vmem:[%s4 + $0x8] sm:$0xff]
        %v698 = vld [vmem:[%s4 + $0x10] sm:$0xff]
        %v699 = vld [vmem:[%s4 + $0x18] sm:$0xff]
        %701 = vset.pattern.permute.xlu0 0
        %702 = vperm.xlu0 %701, %v696
        %v703 = vpop.permute.xlu0 %702
        %706 = vset.pattern.permute.xlu0 0
        %707 = vperm.xlu0 %706, %v697
        %v708 = vpop.permute.xlu0 %707
        %711 = vset.pattern.permute.xlu0 0
        %712 = vperm.xlu0 %711, %v698
        %v713 = vpop.permute.xlu0 %712
        %716 = vset.pattern.permute.xlu0 0
        %717 = vperm.xlu0 %716, %v699
        %v718 = vpop.permute.xlu0 %717
        %v720 = vmul.f32 %v678, %v703
        %v721 = vmul.f32 %v683, %v708
        %v722 = vmul.f32 %v688, %v713
        %v723 = vmul.f32 %v693, %v718
        %v724 = vld [vmem:[%s5] sm:$0xff]
        %v725 = vld [vmem:[%s5 + $0x8] sm:$0xff]
        %v726 = vld [vmem:[%s5 + $0x10] sm:$0xff]
        %v727 = vld [vmem:[%s5 + $0x18] sm:$0xff]
        %729 = vset.pattern.permute.xlu0 0
        %730 = vperm.xlu0 %729, %v724
        %v731 = vpop.permute.xlu0 %730
        %734 = vset.pattern.permute.xlu0 0
        %735 = vperm.xlu0 %734, %v725
        %v736 = vpop.permute.xlu0 %735
        %739 = vset.pattern.permute.xlu0 0
        %740 = vperm.xlu0 %739, %v726
        %v741 = vpop.permute.xlu0 %740
        %744 = vset.pattern.permute.xlu0 0
        %745 = vperm.xlu0 %744, %v727
        %v746 = vpop.permute.xlu0 %745
        %v748 = vadd.f32 %v720, %v731
        %v749 = vadd.f32 %v721, %v736
        %v750 = vadd.f32 %v722, %v741
        %v751 = vadd.f32 %v723, %v746
        %v752 = vmax.f32 %v748, 0.0
        %v753 = vmax.f32 %v749, 0.0
        %v754 = vmax.f32 %v750, 0.0
        %v755 = vmax.f32 %v751, 0.0
        %v756 = vld [vmem:[#allocation3] sm:$0xff]
        %v757 = vld [vmem:[#allocation3 + $0x8] sm:$0xff]
        %v758 = vld [vmem:[#allocation3 + $0x10] sm:$0xff]
        %v759 = vld [vmem:[#allocation3 + $0x18] sm:$0xff]
        %vm760 = vcmask 261120
        %v762 = vsel %vm760, %v756, 0
        %v765 = vsel %vm760, %v757, 0
        %v768 = vsel %vm760, %v758, 0
        %v771 = vsel %vm760, %v759, 0
        %773 = vmatprep.subr.mxu0 0.0
        %774 = vmatpush1.msra.mxu0 0.0
        %775 = vmatprep.subr.mxu0 0.0
        %776 = vmatpush1.msra.mxu0 0.0
        %777 = vmatprep.subr.mxu0 0.0
        %778 = vmatpush1.msra.mxu0 0.0
        %779 = vmatprep.subr.mxu0 0.0
        %780 = vmatpush1.msra.mxu0 0.0
        %781 = vmatprep.subr.mxu0 0.0
        %782 = vmatpush1.msra.mxu0 0.0
        %783 = vmatprep.subr.mxu0 0.0
        %784 = vmatpush1.msra.mxu0 0.0
        %785 = vmatprep.subr.mxu0 0.0
        %786 = vmatpush1.msra.mxu0 0.0
        %787 = vmatprep.subr.mxu0 0.0
        %788 = vmatpush1.msra.mxu0 0.0
        %789 = vmatprep.subr.mxu0 0.0
        %790 = vmatpush1.msra.mxu0 0.0
        %791 = vmatprep.subr.mxu0 0.0
        %792 = vmatpush1.msra.mxu0 0.0
        %793 = vmatprep.subr.mxu0 0.0
        %794 = vmatpush1.msra.mxu0 0.0
        %795 = vmatprep.subr.mxu0 0.0
        %796 = vmatpush1.msra.mxu0 0.0
        %797 = vmatprep.subr.mxu0 0.0
        %798 = vmatpush1.msra.mxu0 %v755
        %799 = vmatprep.subr.mxu0 0.0
        %800 = vmatpush1.msra.mxu0 %v754
        %801 = vmatprep.subr.mxu0 0.0
        %802 = vmatpush1.msra.mxu0 %v753
        %803 = vmatprep.subr.mxu0 0.0
        %804 = vmatpush1.msra.mxu0 %v752
        %805 = vmatprep.subr.mxu0 0.0
        %806 = vmatpush2.msra.mxu0 0.0
        %807 = vmatprep.subr.mxu0 0.0
        %808 = vmatpush2.msra.mxu0 0.0
        %809 = vmatprep.subr.mxu0 0.0
        %810 = vmatpush2.msra.mxu0 0.0
        %811 = vmatprep.subr.mxu0 0.0
        %812 = vmatpush2.msra.mxu0 0.0
        %813 = vmatprep.subr.mxu0 0.0
        %814 = vmatpush2.msra.mxu0 0.0
        %815 = vmatprep.subr.mxu0 0.0
        %816 = vmatpush2.msra.mxu0 0.0
        %817 = vmatprep.subr.mxu0 0.0
        %818 = vmatpush2.msra.mxu0 0.0
        %819 = vmatprep.subr.mxu0 0.0
        %820 = vmatpush2.msra.mxu0 0.0
        %821 = vmatprep.subr.mxu0 0.0
        %822 = vmatpush2.msra.mxu0 0.0
        %823 = vmatprep.subr.mxu0 0.0
        %824 = vmatpush2.msra.mxu0 0.0
        %825 = vmatprep.subr.mxu0 0.0
        %826 = vmatpush2.msra.mxu0 0.0
        %827 = vmatprep.subr.mxu0 0.0
        %828 = vmatpush2.msra.mxu0 0.0
        %829 = vmatprep.subr.mxu0 0.0
        %830 = vmatpush2.msra.mxu0 0.0
        %831 = vmatprep.subr.mxu0 0.0
        %832 = vmatpush2.msra.mxu0 0.0
        %833 = vmatprep.subr.mxu0 0.0
        %834 = vmatpush2.msra.mxu0 0.0
        %835 = vmatprep.subr.mxu0 0.0
        %836 = vmatpush2.msra.mxu0 0.0
        %837 = vmatprep.mubr.f32.mxu0 0.0
        %838 = vmatmul.mubr.f32.gmra.mxu0 %v762
        %v839 = vpop.f32.mrf.mxu0
        %v840 = vadd.f32 0.0, %v839
        %v841 = vpop.f32.mrf.mxu0
        %842 = vmatprep.mubr.f32.mxu0 0.0
        %843 = vmatmul.mubr.f32.gmra.mxu0 %v765
        %v844 = vpop.f32.mrf.mxu0
        %v845 = vadd.f32 0.0, %v844
        %v846 = vpop.f32.mrf.mxu0
        %847 = vmatprep.mubr.f32.mxu0 0.0
        %848 = vmatmul.mubr.f32.gmra.mxu0 %v768
        %v849 = vpop.f32.mrf.mxu0
        %v850 = vadd.f32 0.0, %v849
        %v851 = vpop.f32.mrf.mxu0
        %852 = vmatprep.mubr.f32.mxu0 0.0
        %853 = vmatmul.mubr.f32.gmra.mxu0 %v771
        %v854 = vpop.f32.mrf.mxu0
        %v855 = vadd.f32 0.0, %v854
        %v856 = vpop.f32.mrf.mxu0
        %857 = vdwg.mxu0
        %v858 = vld [vmem:[%s7] sm:$0xff]
        %v859 = vld [vmem:[%s7 + $0x8] sm:$0xff]
        %v860 = vld [vmem:[%s7 + $0x10] sm:$0xff]
        %v861 = vld [vmem:[%s7 + $0x18] sm:$0xff]
        %863 = vset.pattern.permute.xlu0 0
        %864 = vperm.xlu0 %863, %v858
        %v865 = vpop.permute.xlu0 %864
        %868 = vset.pattern.permute.xlu0 0
        %869 = vperm.xlu0 %868, %v859
        %v870 = vpop.permute.xlu0 %869
        %873 = vset.pattern.permute.xlu0 0
        %874 = vperm.xlu0 %873, %v860
        %v875 = vpop.permute.xlu0 %874
        %878 = vset.pattern.permute.xlu0 0
        %879 = vperm.xlu0 %878, %v861
        %v880 = vpop.permute.xlu0 %879
        %v882 = vmul.f32 %v840, %v865
        %v883 = vmul.f32 %v845, %v870
        %v884 = vmul.f32 %v850, %v875
        %v885 = vmul.f32 %v855, %v880
        %v886 = vld [vmem:[%s8] sm:$0xff]
        %v887 = vld [vmem:[%s8 + $0x8] sm:$0xff]
        %v888 = vld [vmem:[%s8 + $0x10] sm:$0xff]
        %v889 = vld [vmem:[%s8 + $0x18] sm:$0xff]
        %891 = vset.pattern.permute.xlu0 0
        %892 = vperm.xlu0 %891, %v886
        %v893 = vpop.permute.xlu0 %892
        %896 = vset.pattern.permute.xlu0 0
        %897 = vperm.xlu0 %896, %v887
        %v898 = vpop.permute.xlu0 %897
        %901 = vset.pattern.permute.xlu0 0
        %902 = vperm.xlu0 %901, %v888
        %v903 = vpop.permute.xlu0 %902
        %906 = vset.pattern.permute.xlu0 0
        %907 = vperm.xlu0 %906, %v889
        %v908 = vpop.permute.xlu0 %907
        %v910 = vadd.f32 %v882, %v893
        %v911 = vadd.f32 %v883, %v898
        %v912 = vadd.f32 %v884, %v903
        %v913 = vadd.f32 %v885, %v908
        %v914 = vmax.f32 %v910, 0.0
        %v915 = vmax.f32 %v911, 0.0
        %v916 = vmax.f32 %v912, 0.0
        %v917 = vmax.f32 %v913, 0.0
        %v918 = vld [vmem:[%s9] sm:$0x1]
        %v919 = vld [vmem:[#allocation2] sm:$0x1]
        %921 = vset.pattern.permute.xlu0 0
        %922 = vperm.xlu0 %921, %v919
        %v923 = vpop.permute.xlu0 %922
        %v925 = vlaneseq
        %v926 = vshrl.u32 %v925, 7
        %v927 = vsub.s32 0, %v926
        %v928 = vrot.slane %v923, %v927
        %v930 = vsel %vm760, %v918, 0
        %932 = vmatprep.subr.mxu0 0.0
        %933 = vmatpush1.msra.mxu0 0.0
        %934 = vmatprep.subr.mxu0 0.0
        %935 = vmatpush1.msra.mxu0 0.0
        %936 = vmatprep.subr.mxu0 0.0
        %937 = vmatpush1.msra.mxu0 0.0
        %938 = vmatprep.subr.mxu0 0.0
        %939 = vmatpush1.msra.mxu0 0.0
        %940 = vmatprep.subr.mxu0 0.0
        %941 = vmatpush1.msra.mxu0 0.0
        %942 = vmatprep.subr.mxu0 0.0
        %943 = vmatpush1.msra.mxu0 0.0
        %944 = vmatprep.subr.mxu0 0.0
        %945 = vmatpush1.msra.mxu0 0.0
        %946 = vmatprep.subr.mxu0 0.0
        %947 = vmatpush1.msra.mxu0 0.0
        %948 = vmatprep.subr.mxu0 0.0
        %949 = vmatpush1.msra.mxu0 0.0
        %950 = vmatprep.subr.mxu0 0.0
        %951 = vmatpush1.msra.mxu0 0.0
        %952 = vmatprep.subr.mxu0 0.0
        %953 = vmatpush1.msra.mxu0 0.0
        %954 = vmatprep.subr.mxu0 0.0
        %955 = vmatpush1.msra.mxu0 0.0
        %956 = vmatprep.subr.mxu0 0.0
        %957 = vmatpush1.msra.mxu0 %v917
        %958 = vmatprep.subr.mxu0 0.0
        %959 = vmatpush1.msra.mxu0 %v916
        %960 = vmatprep.subr.mxu0 0.0
        %961 = vmatpush1.msra.mxu0 %v915
        %962 = vmatprep.subr.mxu0 0.0
        %963 = vmatpush1.msra.mxu0 %v914
        %964 = vmatprep.subr.mxu0 0.0
        %965 = vmatpush2.msra.mxu0 0.0
        %966 = vmatprep.subr.mxu0 0.0
        %967 = vmatpush2.msra.mxu0 0.0
        %968 = vmatprep.subr.mxu0 0.0
        %969 = vmatpush2.msra.mxu0 0.0
        %970 = vmatprep.subr.mxu0 0.0
        %971 = vmatpush2.msra.mxu0 0.0
        %972 = vmatprep.subr.mxu0 0.0
        %973 = vmatpush2.msra.mxu0 0.0
        %974 = vmatprep.subr.mxu0 0.0
        %975 = vmatpush2.msra.mxu0 0.0
        %976 = vmatprep.subr.mxu0 0.0
        %977 = vmatpush2.msra.mxu0 0.0
        %978 = vmatprep.subr.mxu0 0.0
        %979 = vmatpush2.msra.mxu0 0.0
        %980 = vmatprep.subr.mxu0 0.0
        %981 = vmatpush2.msra.mxu0 0.0
        %982 = vmatprep.subr.mxu0 0.0
        %983 = vmatpush2.msra.mxu0 0.0
        %984 = vmatprep.subr.mxu0 0.0
        %985 = vmatpush2.msra.mxu0 0.0
        %986 = vmatprep.subr.mxu0 0.0
        %987 = vmatpush2.msra.mxu0 0.0
        %988 = vmatprep.subr.mxu0 0.0
        %989 = vmatpush2.msra.mxu0 0.0
        %990 = vmatprep.subr.mxu0 0.0
        %991 = vmatpush2.msra.mxu0 0.0
        %992 = vmatprep.subr.mxu0 0.0
        %993 = vmatpush2.msra.mxu0 0.0
        %994 = vmatprep.subr.mxu0 0.0
        %995 = vmatpush2.msra.mxu0 0.0
        %996 = vmatprep.mubr.f32.mxu0 0.0
        %997 = vmatmul.mubr.f32.gmra.mxu0 %v930
        %v998 = vpop.f32.mrf.mxu0
        %v999 = vadd.f32 %v928, %v998
        %v1000 = vpop.f32.mrf.mxu0
        %1001 = vdwg.mxu0
        %v1002 = vmax.f32 %v999, 0.0
        %1003 = vst [vmem:[%s530] sm:$0x1] %v1002
        %1005 = vset.pattern.permute.xlu0 3
        %1006 = vperm.xlu0 %1005, %v593
        %v1007 = vpop.permute.xlu0 %1006
        %v1009 = vlaneseq
        %v1010 = vshrl.u32 %v1009, 7
        %v1011 = vsub.s32 0, %v1010
        %v1012 = vrot.slane %v592, %v1011
        %v1013 = vmul.f32 %v1007, %v1012
        %1014 = vset.pattern.permute.xlu0 4
        %1015 = vperm.xlu0 %1014, %v593
        %v1016 = vpop.permute.xlu0 %1015
        %v1018 = vlaneseq
        %v1019 = vshrl.u32 %v1018, 7
        %v1020 = vsub.s32 1, %v1019
        %v1021 = vrot.slane %v592, %v1020
        %v1022 = vmul.f32 %v1016, %v1021
        %v1023 = vadd.f32 %v1013, %v1022
        %1024 = vset.pattern.permute.xlu0 5
        %1025 = vperm.xlu0 %1024, %v593
        %v1026 = vpop.permute.xlu0 %1025
        %v1028 = vlaneseq
        %v1029 = vshrl.u32 %v1028, 7
        %v1030 = vsub.s32 2, %v1029
        %v1031 = vrot.slane %v592, %v1030
        %v1032 = vmul.f32 %v1026, %v1031
        %v1033 = vadd.f32 %v1023, %v1032
        %1034 = vrot.lane.b32.xlu0 %v593, 125
        %v1035 = vpop.permute.xlu0 %1034
        %v1037 = vmul.f32 %v593, %v1035
        %1039 = vrot.lane.b32.xlu0 %v1037, 127
        %v1040 = vpop.permute.xlu0 %1039
        %v1042 = vadd.f32 %v1037, %v1040
        %1043 = vrot.lane.b32.xlu0 %v1037, 126
        %v1044 = vpop.permute.xlu0 %1043
        %v1046 = vadd.f32 %v1042, %v1044
        %1048 = vset.pattern.permute.xlu0 0
        %1049 = vperm.xlu0 %1048, %v1046
        %v1050 = vpop.permute.xlu0 %1049
        %v1052 = vsub.f32 %v1033, %v1050
        %v1053 = vand.u32 2147483647, %v1052
        %vm1054 = vcmp.lt.f32.partialorder %v1053, 0.1
        %1055 = vset.pattern.permute.xlu0 6
        %1056 = vperm.xlu0 %1055, %v593
        %v1057 = vpop.permute.xlu0 %1056
        %vm1059 = vcmp.ge.f32.partialorder %v1012, %v1057
        %1060 = vset.pattern.permute.xlu0 9
        %1061 = vperm.xlu0 %1060, %v593
        %v1062 = vpop.permute.xlu0 %1061
        %vm1064 = vcmp.lt.f32.partialorder %v1012, %v1062
        %vm1065 = vmand %vm1059, %vm1064
        %vm1066 = vcmp.eq.f32.partialorder %v593, 0.0
        %v1067 = vsel %vm1066, 1, 0
        %1068 = vset.pattern.permute.xlu0 9
        %1069 = vperm.xlu0 %1068, %v1067
        %v1070 = vpop.permute.xlu0 %1069
        %vm1071 = vcmp.eq.s32.totalorder %v1070, 1
        %vm1072 = vmor %vm1071, %vm1065
        %vm1073 = vmand %vm1054, %vm1072
        %1074 = vset.pattern.permute.xlu0 7
        %1075 = vperm.xlu0 %1074, %v593
        %v1076 = vpop.permute.xlu0 %1075
        %vm1078 = vcmp.ge.f32.partialorder %v1021, %v1076
        %1079 = vset.pattern.permute.xlu0 10
        %1080 = vperm.xlu0 %1079, %v593
        %v1081 = vpop.permute.xlu0 %1080
        %vm1083 = vcmp.lt.f32.partialorder %v1021, %v1081
        %vm1084 = vmand %vm1078, %vm1083
        %1085 = vset.pattern.permute.xlu0 10
        %1086 = vperm.xlu0 %1085, %v1067
        %v1087 = vpop.permute.xlu0 %1086
        %vm1088 = vcmp.eq.s32.totalorder %v1087, 1
        %vm1089 = vmor %vm1088, %vm1084
        %vm1090 = vmand %vm1073, %vm1089
        %1091 = vset.pattern.permute.xlu0 8
        %1092 = vperm.xlu0 %1091, %v593
        %v1093 = vpop.permute.xlu0 %1092
        %vm1095 = vcmp.ge.f32.partialorder %v1031, %v1093
        %1096 = vset.pattern.permute.xlu0 11
        %1097 = vperm.xlu0 %1096, %v593
        %v1098 = vpop.permute.xlu0 %1097
        %vm1100 = vcmp.lt.f32.partialorder %v1031, %v1098
        %vm1101 = vmand %vm1095, %vm1100
        %1102 = vset.pattern.permute.xlu0 11
        %1103 = vperm.xlu0 %1102, %v1067
        %v1104 = vpop.permute.xlu0 %1103
        %vm1105 = vcmp.eq.s32.totalorder %v1104, 1
        %vm1106 = vmor %vm1105, %vm1101
        %vm1107 = vmand %vm1090, %vm1106
        %vm1108 = vcmp.gt.f32.partialorder %v1002, 0.0
        %v1109 = vsel %vm1108, 1, 0
        %v1110 = vlaneseq
        %v1111 = vshrl.u32 %v1110, 7
        %v1112 = vsub.s32 0, %v1111
        %v1113 = vrot.slane %v1109, %v1112
        %vm1114 = vcmp.eq.s32.totalorder %v1113, 1
        %vm1115 = vmand %vm1107, %vm1114
        %vm1116 = vmxor %vm1108, 1
        %v1117 = vsel %vm1116, 1, 0
        %v1118 = vlaneseq
        %v1119 = vshrl.u32 %v1118, 7
        %v1120 = vsub.s32 0, %v1119
        %v1121 = vrot.slane %v1117, %v1120
        %vm1122 = vcmp.eq.s32.totalorder %v1121, 1
        %vm1123 = vmand %vm1107, %vm1122
        %v1124 = vsel %vm1107, 1, 0
        %v1125 = vcvt.s32.f32 %v1124
        %1126 = vst [vmem:[%s571] sm:$0x7] %v1125
        %v1127 = vsel %vm1115, 1, 0
        %v1128 = vcvt.s32.f32 %v1127
        %1129 = vst [vmem:[%s575] sm:$0x7] %v1128
        %v1130 = vsel %vm1123, 1, 0
        %v1131 = vcvt.s32.f32 %v1130
        %1132 = vst [vmem:[%s579] sm:$0x7] %v1131
        %v1134 = vunpack.c.l.s4 1966171168
        %v1135 = vunpack.c.0.s8 %v1134
        %v1136 = vlaneseq
        %v1137 = vshrl.u32 %v1136, 7
        %v1138 = vsub.s32 %v1135, %v1137
        %v1139 = vrot.slane %v1127, %v1138
        %v1140 = vcombine.high %v1139, %v1139
        %v1142 = vunpack.c.l.s4 1966171168
        %v1143 = vunpack.c.0.s8 %v1142
        %v1144 = vlaneseq
        %v1145 = vshrl.u32 %v1144, 7
        %v1146 = vsub.s32 %v1143, %v1145
        %v1147 = vrot.slane %v1139, %v1146
        %v1149 = vunpack.c.l.s4 1966171168
        %v1150 = vunpack.c.0.s8 %v1149
        %v1151 = vlaneseq
        %v1152 = vshrl.u32 %v1151, 7
        %v1153 = vsub.s32 %v1150, %v1152
        %v1154 = vrot.slane %v1140, %v1153
        %v1155 = vcombine.high %v1147, %v1147
        %vm1156 = vcmp.ne.s32.totalorder %v1147, 0
        %vm1157 = vcmp.ne.s32.totalorder %v1154, 0
        %vm1158 = vcmp.ne.s32.totalorder %v1155, 0
        %v1159 = vsel %vm1156, 1, 0
        %v1160 = vsel %vm1157, 1, 0
        %v1161 = vsel %vm1158, 1, 0
        %v1162 = vlaneseq
        %v1163 = vshrl.u32 %v1162, 7
        %v1164 = vsub.s32 0, %v1163
        %v1165 = vrot.slane %v1159, %v1164
        %v1166 = vlaneseq
        %v1167 = vshrl.u32 %v1166, 7
        %v1168 = vsub.s32 0, %v1167
        %v1169 = vrot.slane %v1160, %v1168
        %v1170 = vlaneseq
        %v1171 = vshrl.u32 %v1170, 7
        %v1172 = vsub.s32 0, %v1171
        %v1173 = vrot.slane %v1161, %v1172
        %vm1174 = vcmp.eq.s32.totalorder %v1165, 1
        %vm1175 = vcmp.eq.s32.totalorder %v1169, 1
        %vm1176 = vcmp.eq.s32.totalorder %v1173, 1
        %v1177 = vsel %vm1174, %v914, -1e+30
        %v1178 = vsel %vm1174, %v915, -1e+30
        %v1179 = vsel %vm1174, %v916, -1e+30
        %v1180 = vsel %vm1174, %v917, -1e+30
        %v1181 = vsel %vm1175, %v914, -1e+30
        %v1182 = vsel %vm1175, %v915, -1e+30
        %v1183 = vsel %vm1175, %v916, -1e+30
        %v1184 = vsel %vm1175, %v917, -1e+30
        %v1185 = vsel %vm1176, %v914, -1e+30
        %v1186 = vsel %vm1176, %v915, -1e+30
        %v1187 = vsel %vm1176, %v916, -1e+30
        %v1188 = vsel %vm1176, %v917, -1e+30
        %1189 = vmax.xlane.f32.xlu0 %v1177
        %v1190 = vpop.xlane.xlu0 %1189
        %1191 = vmax.xlane.f32.xlu0 %v1178
        %v1192 = vpop.xlane.xlu0 %1191
        %1193 = vmax.xlane.f32.xlu0 %v1179
        %v1194 = vpop.xlane.xlu0 %1193
        %1195 = vmax.xlane.f32.xlu0 %v1180
        %v1196 = vpop.xlane.xlu0 %1195
        %1197 = vmax.xlane.f32.xlu0 %v1181
        %v1198 = vpop.xlane.xlu0 %1197
        %1199 = vmax.xlane.f32.xlu0 %v1182
        %v1200 = vpop.xlane.xlu0 %1199
        %1201 = vmax.xlane.f32.xlu0 %v1183
        %v1202 = vpop.xlane.xlu0 %1201
        %1203 = vmax.xlane.f32.xlu0 %v1184
        %v1204 = vpop.xlane.xlu0 %1203
        %1205 = vmax.xlane.f32.xlu0 %v1185
        %v1206 = vpop.xlane.xlu0 %1205
        %1207 = vmax.xlane.f32.xlu0 %v1186
        %v1208 = vpop.xlane.xlu0 %1207
        %1209 = vmax.xlane.f32.xlu0 %v1187
        %v1210 = vpop.xlane.xlu0 %1209
        %1211 = vmax.xlane.f32.xlu0 %v1188
        %v1212 = vpop.xlane.xlu0 %1211
        %v1214 = vunpack.c.l.s4 1966171168
        %v1215 = vunpack.c.0.s8 %v1214
        %v1216 = vlaneseq
        %v1217 = vshrl.u32 %v1216, 7
        %v1218 = vsub.s32 %v1215, %v1217
        %v1219 = vrot.slane %v1130, %v1218
        %v1220 = vcombine.high %v1219, %v1219
        %v1222 = vunpack.c.l.s4 1966171168
        %v1223 = vunpack.c.0.s8 %v1222
        %v1224 = vlaneseq
        %v1225 = vshrl.u32 %v1224, 7
        %v1226 = vsub.s32 %v1223, %v1225
        %v1227 = vrot.slane %v1219, %v1226
        %v1229 = vunpack.c.l.s4 1966171168
        %v1230 = vunpack.c.0.s8 %v1229
        %v1231 = vlaneseq
        %v1232 = vshrl.u32 %v1231, 7
        %v1233 = vsub.s32 %v1230, %v1232
        %v1234 = vrot.slane %v1220, %v1233
        %v1235 = vcombine.high %v1227, %v1227
        %vm1236 = vcmp.ne.s32.totalorder %v1227, 0
        %vm1237 = vcmp.ne.s32.totalorder %v1234, 0
        %vm1238 = vcmp.ne.s32.totalorder %v1235, 0
        %v1239 = vsel %vm1236, 1, 0
        %v1240 = vsel %vm1237, 1, 0
        %v1241 = vsel %vm1238, 1, 0
        %v1242 = vlaneseq
        %v1243 = vshrl.u32 %v1242, 7
        %v1244 = vsub.s32 0, %v1243
        %v1245 = vrot.slane %v1239, %v1244
        %v1246 = vlaneseq
        %v1247 = vshrl.u32 %v1246, 7
        %v1248 = vsub.s32 0, %v1247
        %v1249 = vrot.slane %v1240, %v1248
        %v1250 = vlaneseq
        %v1251 = vshrl.u32 %v1250, 7
        %v1252 = vsub.s32 0, %v1251
        %v1253 = vrot.slane %v1241, %v1252
        %vm1254 = vcmp.eq.s32.totalorder %v1245, 1
        %vm1255 = vcmp.eq.s32.totalorder %v1249, 1
        %vm1256 = vcmp.eq.s32.totalorder %v1253, 1
        %v1257 = vsel %vm1254, %v914, -1e+30
        %v1258 = vsel %vm1254, %v915, -1e+30
        %v1259 = vsel %vm1254, %v916, -1e+30
        %v1260 = vsel %vm1254, %v917, -1e+30
        %v1261 = vsel %vm1255, %v914, -1e+30
        %v1262 = vsel %vm1255, %v915, -1e+30
        %v1263 = vsel %vm1255, %v916, -1e+30
        %v1264 = vsel %vm1255, %v917, -1e+30
        %v1265 = vsel %vm1256, %v914, -1e+30
        %v1266 = vsel %vm1256, %v915, -1e+30
        %v1267 = vsel %vm1256, %v916, -1e+30
        %v1268 = vsel %vm1256, %v917, -1e+30
        %1269 = vmax.xlane.f32.xlu0 %v1257
        %v1270 = vpop.xlane.xlu0 %1269
        %1271 = vmax.xlane.f32.xlu0 %v1258
        %v1272 = vpop.xlane.xlu0 %1271
        %1273 = vmax.xlane.f32.xlu0 %v1259
        %v1274 = vpop.xlane.xlu0 %1273
        %1275 = vmax.xlane.f32.xlu0 %v1260
        %v1276 = vpop.xlane.xlu0 %1275
        %1277 = vmax.xlane.f32.xlu0 %v1261
        %v1278 = vpop.xlane.xlu0 %1277
        %1279 = vmax.xlane.f32.xlu0 %v1262
        %v1280 = vpop.xlane.xlu0 %1279
        %1281 = vmax.xlane.f32.xlu0 %v1263
        %v1282 = vpop.xlane.xlu0 %1281
        %1283 = vmax.xlane.f32.xlu0 %v1264
        %v1284 = vpop.xlane.xlu0 %1283
        %1285 = vmax.xlane.f32.xlu0 %v1265
        %v1286 = vpop.xlane.xlu0 %1285
        %1287 = vmax.xlane.f32.xlu0 %v1266
        %v1288 = vpop.xlane.xlu0 %1287
        %1289 = vmax.xlane.f32.xlu0 %v1267
        %v1290 = vpop.xlane.xlu0 %1289
        %1291 = vmax.xlane.f32.xlu0 %v1268
        %v1292 = vpop.xlane.xlu0 %1291
        %vm1293 = vcmask 1042432
        %v1294 = vsel %vm1293, %v1125, 0.0
        %1295 = vadd.xlane.f32.xlu0 %v1294
        %v1296 = vpop.xlane.xlu0 %1295
        %v1297 = vsel %vm1293, %v1128, 0.0
        %1298 = vadd.xlane.f32.xlu0 %v1297
        %v1299 = vpop.xlane.xlu0 %1298
        %v1300 = vsel %vm1293, %v1131, 0.0
        %1301 = vadd.xlane.f32.xlu0 %v1300
        %v1302 = vpop.xlane.xlu0 %1301
        %vm1303 = vcmp.gt.f32.partialorder %v1299, 0.0
        %v1304 = vsel %vm1303, 1, 0
        %vm1305 = vcmp.eq.s32.totalorder %v1304, 1
        %v1318 = vlaneseq
        %v1319 = vand.u32 %v1318, 127
        %v1320 = vlaneseq
        %v1321 = vshrl.u32 %v1320, 7
        %v1322 = vsub.s32 %v1319, %v1321
        %v1323 = vrot.slane %v1190, %v1322
        %v1324 = vadd.s32 %v1319, 4294967288
        %v1325 = vlaneseq
        %v1326 = vshrl.u32 %v1325, 7
        %v1327 = vsub.s32 %v1324, %v1326
        %v1328 = vrot.slane %v1192, %v1327
        %vm1329 = vcmask 130112
        %v1330 = vsel %vm1329, %v1328, %v1323
        %v1331 = vadd.s32 %v1319, 4294967280
        %v1332 = vlaneseq
        %v1333 = vshrl.u32 %v1332, 7
        %v1334 = vsub.s32 %v1331, %v1333
        %v1335 = vrot.slane %v1194, %v1334
        %vm1336 = vcmask 195712
        %v1337 = vsel %vm1336, %v1335, %v1330
        %v1338 = vadd.s32 %v1319, 4294967272
        %v1339 = vlaneseq
        %v1340 = vshrl.u32 %v1339, 7
        %v1341 = vsub.s32 %v1338, %v1340
        %v1342 = vrot.slane %v1196, %v1341
        %vm1343 = vcmask 261312
        %v1344 = vsel %vm1343, %v1342, %v1337
        %v1345 = vlaneseq
        %v1346 = vshrl.u32 %v1345, 7
        %v1347 = vsub.s32 %v1319, %v1346
        %v1348 = vrot.slane %v1198, %v1347
        %v1349 = vlaneseq
        %v1350 = vshrl.u32 %v1349, 7
        %v1351 = vsub.s32 %v1324, %v1350
        %v1352 = vrot.slane %v1200, %v1351
        %v1353 = vsel %vm1329, %v1352, %v1348
        %v1354 = vlaneseq
        %v1355 = vshrl.u32 %v1354, 7
        %v1356 = vsub.s32 %v1331, %v1355
        %v1357 = vrot.slane %v1202, %v1356
        %v1358 = vsel %vm1336, %v1357, %v1353
        %v1359 = vlaneseq
        %v1360 = vshrl.u32 %v1359, 7
        %v1361 = vsub.s32 %v1338, %v1360
        %v1362 = vrot.slane %v1204, %v1361
        %v1363 = vsel %vm1343, %v1362, %v1358
        %v1364 = vlaneseq
        %v1365 = vshrl.u32 %v1364, 7
        %v1366 = vsub.s32 %v1319, %v1365
        %v1367 = vrot.slane %v1206, %v1366
        %v1368 = vlaneseq
        %v1369 = vshrl.u32 %v1368, 7
        %v1370 = vsub.s32 %v1324, %v1369
        %v1371 = vrot.slane %v1208, %v1370
        %v1372 = vsel %vm1329, %v1371, %v1367
        %v1373 = vlaneseq
        %v1374 = vshrl.u32 %v1373, 7
        %v1375 = vsub.s32 %v1331, %v1374
        %v1376 = vrot.slane %v1210, %v1375
        %v1377 = vsel %vm1336, %v1376, %v1372
        %v1378 = vlaneseq
        %v1379 = vshrl.u32 %v1378, 7
        %v1380 = vsub.s32 %v1338, %v1379
        %v1381 = vrot.slane %v1212, %v1380
        %v1382 = vsel %vm1343, %v1381, %v1377
        %vm1383 = vcmask 1041409
        %v1384 = vsel %vm1383, %v1363, %v1344
        %vm1385 = vcmask 1042434
        %v1386 = vsel %vm1385, %v1382, %v1384
        %v1388 = vsel %vm1305, %v1386, 0.0
        %vm1389 = vcmp.gt.f32.partialorder %v1302, 0.0
        %v1390 = vsel %vm1389, 1, 0
        %vm1391 = vcmp.eq.s32.totalorder %v1390, 1
        %v1404 = vlaneseq
        %v1405 = vshrl.u32 %v1404, 7
        %v1406 = vsub.s32 %v1319, %v1405
        %v1407 = vrot.slane %v1270, %v1406
        %v1408 = vlaneseq
        %v1409 = vshrl.u32 %v1408, 7
        %v1410 = vsub.s32 %v1324, %v1409
        %v1411 = vrot.slane %v1272, %v1410
        %v1412 = vsel %vm1329, %v1411, %v1407
        %v1413 = vlaneseq
        %v1414 = vshrl.u32 %v1413, 7
        %v1415 = vsub.s32 %v1331, %v1414
        %v1416 = vrot.slane %v1274, %v1415
        %v1417 = vsel %vm1336, %v1416, %v1412
        %v1418 = vlaneseq
        %v1419 = vshrl.u32 %v1418, 7
        %v1420 = vsub.s32 %v1338, %v1419
        %v1421 = vrot.slane %v1276, %v1420
        %v1422 = vsel %vm1343, %v1421, %v1417
        %v1423 = vlaneseq
        %v1424 = vshrl.u32 %v1423, 7
        %v1425 = vsub.s32 %v1319, %v1424
        %v1426 = vrot.slane %v1278, %v1425
        %v1427 = vlaneseq
        %v1428 = vshrl.u32 %v1427, 7
        %v1429 = vsub.s32 %v1324, %v1428
        %v1430 = vrot.slane %v1280, %v1429
        %v1431 = vsel %vm1329, %v1430, %v1426
        %v1432 = vlaneseq
        %v1433 = vshrl.u32 %v1432, 7
        %v1434 = vsub.s32 %v1331, %v1433
        %v1435 = vrot.slane %v1282, %v1434
        %v1436 = vsel %vm1336, %v1435, %v1431
        %v1437 = vlaneseq
        %v1438 = vshrl.u32 %v1437, 7
        %v1439 = vsub.s32 %v1338, %v1438
        %v1440 = vrot.slane %v1284, %v1439
        %v1441 = vsel %vm1343, %v1440, %v1436
        %v1442 = vlaneseq
        %v1443 = vshrl.u32 %v1442, 7
        %v1444 = vsub.s32 %v1319, %v1443
        %v1445 = vrot.slane %v1286, %v1444
        %v1446 = vlaneseq
        %v1447 = vshrl.u32 %v1446, 7
        %v1448 = vsub.s32 %v1324, %v1447
        %v1449 = vrot.slane %v1288, %v1448
        %v1450 = vsel %vm1329, %v1449, %v1445
        %v1451 = vlaneseq
        %v1452 = vshrl.u32 %v1451, 7
        %v1453 = vsub.s32 %v1331, %v1452
        %v1454 = vrot.slane %v1290, %v1453
        %v1455 = vsel %vm1336, %v1454, %v1450
        %v1456 = vlaneseq
        %v1457 = vshrl.u32 %v1456, 7
        %v1458 = vsub.s32 %v1338, %v1457
        %v1459 = vrot.slane %v1292, %v1458
        %v1460 = vsel %vm1343, %v1459, %v1455
        %v1461 = vsel %vm1383, %v1441, %v1422
        %v1462 = vsel %vm1385, %v1460, %v1461
        %v1464 = vsel %vm1391, %v1462, 0.0
        %1466 = vrot.lane.b32.xlu0 %v1464, 32
        %v1467 = vpop.permute.xlu0 %1466
        %v1469 = vsel %vm760, %v1388, %v1467
        %v1470 = vsel %vm598, %v1469, %v1296
        %vm1471 = vcmask 531456
        %v1472 = vsel %vm1471, %v1470, %v1299
        %vm1473 = vcmask 539648
        %v1474 = vsel %vm1473, %v1472, %v1302
        %vm1475 = vcmask 547840
        %v1476 = vsel %vm1475, %v1474, 0.0
        %1477 = vst [vmem:[%s583] sm:$0x7] %v1476
        %s1478 = sand.u32 %s287, 1
        %s1479 = scalar_lea.sflag [#allocation5], %s1478
        %s1480 = sand.u32 %s287, 1
        %s1481 = scalar_lea.vmem [#allocation6], %s1480
        %p1482 = scmp.lt.s32.totalorder %s33, 1
        %s1483 = scalar_select %p1482, %s33, 1
        %s1484 = smul.addr %s1483, 4
        %s1485 = scalar_lea.vmem %s12, %s1484
        %p1486 = scmp.lt.s32.totalorder %s33, 1
        %s1487 = scalar_select %p1486, %s33, 1
        %s1488 = smul.addr %s1487, 4
        %s1489 = scalar_lea.vmem %s13, %s1488
        %p1490 = scmp.lt.s32.totalorder %s33, 1
        %s1491 = scalar_select %p1490, %s33, 1
        %s1492 = smul.addr %s1491, 4
        %s1493 = scalar_lea.vmem %s14, %s1492
        %p1494 = scmp.lt.s32.totalorder %s33, 1
        %s1495 = scalar_select %p1494, %s33, 1
        %s1496 = smul.addr %s1495, 4
        %s1497 = scalar_lea.vmem %s15, %s1496
        // Predicated region
        $region69: #{run.1} parent=63 // pred_check
          %p1498 = pneg %p297
        $region70: #{run.1} parent=63 // pred_check_branch
          %1500 = sbr.rel (%p1498) target = $region72
        $region71: #{run.1} parent=63 // pred_region
          %s1502 = ssub.s32 16, 16
          %1503 = vsyncadd %s1479, %s1502
          %s1504 = smul.addr %s33, 16
          %s1505 = scalar_lea.hbm %s11, %s1504
          %s1507 = sshll.u32 %s1481, 4
          %s1508 = int_to_ptr.vmem [resolvable:$true] %s1507
          %1510 = dma.vmem_to_hbm [thread:$0]  %s1508, 16, %s1505, %s1479
        $region72: #{run.1} parent=63 // pred_fallthru
          _
        // Predicated region
        $region73: #{run.1} parent=63 // pred_check
          %p1511 = pneg %p323
        $region74: #{run.1} parent=63 // pred_check_branch
          %1513 = sbr.rel (%p1511) target = $region76
        $region75: #{run.1} parent=63 // pred_region
          _
        $region76: #{run.1} parent=63 // pred_fallthru
          _
        // Predicated region
        $region77: #{run.1} parent=63 // pred_check
          %p1514 = pneg %p349
        $region78: #{run.1} parent=63 // pred_check_branch
          %1516 = sbr.rel (%p1514) target = $region80
        $region79: #{run.1} parent=63 // pred_region
          _
        $region80: #{run.1} parent=63 // pred_fallthru
          _
        // Predicated region
        $region81: #{run.1} parent=63 // pred_check
          %p1517 = pneg %p375
        $region82: #{run.1} parent=63 // pred_check_branch
          %1519 = sbr.rel (%p1517) target = $region84
        $region83: #{run.1} parent=63 // pred_region
          _
        $region84: #{run.1} parent=63 // pred_fallthru
          _
        // Predicated region
        $region85: #{run.1} parent=63 // pred_check
          %p1520 = pneg %p401
        $region86: #{run.1} parent=63 // pred_check_branch
          %1522 = sbr.rel (%p1520) target = $region88
        $region87: #{run.1} parent=63 // pred_region
          _
        $region88: #{run.1} parent=63 // pred_fallthru
          _
      $region64: #{run.1} parent=5 // pred_fallthru
        _
      %p1523 = scmp.le.s32.totalorder 2, %s28
      // Predicated region
      $region89: #{run.1} parent=5 // pred_check
        %p1524 = pneg %p1523
      $region90: #{run.1} parent=5 // pred_check_branch
        %1526 = sbr.rel (%p1524) target = $region92
      $region91: #{run.1} parent=5 // pred_region
        %s1527 = ssub.s32 %s28, 2
        // Predicated region
        $region93: #{run.1} parent=91 // pred_check
          %p1528 = pneg %p303
        $region94: #{run.1} parent=91 // pred_check_branch
          %1530 = sbr.rel (%p1528) target = $region96
        $region95: #{run.1} parent=91 // pred_region
          %s1531 = sand.u32 %s288, 1
          %s1532 = scalar_lea.sflag [#allocation5], %s1531
          %s1533 = sand.u32 %s288, 1
          %s1534 = scalar_lea.vmem [#allocation6], %s1533
          %1535 = dma.done %s1532, 16
        $region96: #{run.1} parent=91 // pred_fallthru
          _
        // Predicated region
        $region97: #{run.1} parent=91 // pred_check
          %p1536 = pneg %p329
        $region98: #{run.1} parent=91 // pred_check_branch
          %1538 = sbr.rel (%p1536) target = $region100
        $region99: #{run.1} parent=91 // pred_region
          %p1539 = scmp.lt.s32.totalorder %s34, 1
          %s1540 = scalar_select %p1539, %s34, 1
          %s1541 = smul.addr %s1540, 4
          %s1542 = scalar_lea.vmem %s12, %s1541
        $region100: #{run.1} parent=91 // pred_fallthru
          _
        // Predicated region
        $region101: #{run.1} parent=91 // pred_check
          %p1543 = pneg %p355
        $region102: #{run.1} parent=91 // pred_check_branch
          %1545 = sbr.rel (%p1543) target = $region104
        $region103: #{run.1} parent=91 // pred_region
          %p1546 = scmp.lt.s32.totalorder %s34, 1
          %s1547 = scalar_select %p1546, %s34, 1
          %s1548 = smul.addr %s1547, 4
          %s1549 = scalar_lea.vmem %s13, %s1548
        $region104: #{run.1} parent=91 // pred_fallthru
          _
        // Predicated region
        $region105: #{run.1} parent=91 // pred_check
          %p1550 = pneg %p381
        $region106: #{run.1} parent=91 // pred_check_branch
          %1552 = sbr.rel (%p1550) target = $region108
        $region107: #{run.1} parent=91 // pred_region
          %p1553 = scmp.lt.s32.totalorder %s34, 1
          %s1554 = scalar_select %p1553, %s34, 1
          %s1555 = smul.addr %s1554, 4
          %s1556 = scalar_lea.vmem %s14, %s1555
        $region108: #{run.1} parent=91 // pred_fallthru
          _
        // Predicated region
        $region109: #{run.1} parent=91 // pred_check
          %p1557 = pneg %p407
        $region110: #{run.1} parent=91 // pred_check_branch
          %1559 = sbr.rel (%p1557) target = $region112
        $region111: #{run.1} parent=91 // pred_region
          %p1560 = scmp.lt.s32.totalorder %s34, 1
          %s1561 = scalar_select %p1560, %s34, 1
          %s1562 = smul.addr %s1561, 4
          %s1563 = scalar_lea.vmem %s15, %s1562
        $region112: #{run.1} parent=91 // pred_fallthru
          _
      $region92: #{run.1} parent=5 // pred_fallthru
        _
    $region6: #{run.1} parent=1 // loop_footer
      %s32 = sadd.s32 1, %s28
    $region7: #{run.1} parent=1 // loop_footer_branch
      %27 = sbr.rel target = $region3
    $region8: #{run.1} parent=1 // loop_exit
      _
    %1564 = vsyncpa [#allocation4], 1
    %s1565 = scalar_lea.sflag [#allocation4], 1
    %1566 = vsyncpa %s1565, 1
    %1567 = vsyncpa [#allocation5], 1
    %s1568 = scalar_lea.sflag [#allocation5], 1
    %1569 = vsyncpa %s1568, 1

</llo_original>
